<compile_context>
chip_gen: v5e
topology: v5e:2x2
jax: 0.10.0
libtpu: 0.0.40
codegen_flags: <defaults>
</compile_context>

<pallas_src>
import functools

import jax
import jax.numpy as jnp
from jax.experimental import pallas as pl
from jax.experimental.pallas import tpu as pltpu


def upsampling_kernel(x_ref, w_ref, b_ref, r_ref, o_ref, *, split_store):
    # x_ref: (1, TH*W, C)        w_ref: (C, Co)       b_ref: (1, Co) f32
    # r_ref: (1, 2*TH, 2*W, Cr)  o_ref: (1, 2*TH, 2*W, Co+Cr)
    th2, w2 = r_ref.shape[1], r_ref.shape[2]
    th, w = th2 // 2, w2 // 2
    co = w_ref.shape[1]

    # 1x1 conv == one MXU matmul over the whole TH*W low-res block.
    # Native-dtype operands, f32 accumulate, f32 bias epilogue.
    y = jnp.dot(x_ref[0], w_ref[...],
                preferred_element_type=jnp.float32) + b_ref[...]   # (TH*W, Co) f32

    # Early cast (cast-then-duplicate == duplicate-then-cast for nearest):
    # the 4x upsampled intermediate lives in the *output* dtype.
    y = y.astype(o_ref.dtype)

    # Nearest 2x upsample in registers/VMEM:
    # out[2a+i, 2b+j, :] = y[a*W + b, :]
    y = y.reshape(th, 1, w, 1, co)
    y_up = jnp.broadcast_to(y, (th, 2, w, 2, co)).reshape(th2, w2, co)

    if split_store:
        # Lane-aligned Co: two sub-slice stores, no concat temp, r bytes are a
        # pure pass-through copy.
        o_ref[0, :, :, :co] = y_up
        o_ref[0, :, :, co:] = r_ref[0].astype(o_ref.dtype)
    else:
        # Narrow channels: a single dense store beats two lane-misaligned ones.
        o_ref[0] = jnp.concatenate(
            [y_up, r_ref[0].astype(o_ref.dtype)], axis=-1)


def _vmem_limit_bytes():
    """Generation-aware scoped-VMEM limit (v5e/v6e ~96 MiB, v7x ~48 MiB)."""
    try:
        cap = pltpu.get_tpu_info().vmem_capacity_bytes
    except Exception:
        cap = 64 << 20          # conservative (v7x-sized) fallback
    return max(32 << 20, min((cap * 3) // 4, 100 << 20))


def _num_tensorcores():
    """Best-effort TC-per-chip detection (v7x/v4/v5p = 2, v5e/v6e = 1)."""
    try:
        kind = jax.devices()[0].device_kind.lower()
    except Exception:
        return 1
    return 2 if any(t in kind for t in ("v7", "v4", "v5p")) else 1


def _pick_block_rows(N, H, W, C, Co, Cr, x_item, w_item, o_item,
                     split_store, multi_tc, vmem_budget_bytes):
    """Largest valid TH (divisor of H) whose working set fits the budget."""
    Cout = Co + Cr

    def bytes_needed(th):
        # Double-buffered only for the DMA'd blocks.
        dma = 2 * (th * W * C * x_item                 # x block
                   + 4 * th * W * Cr * x_item          # r block (2TH x 2W)
                   + 4 * th * W * Cout * o_item)       # out block
        dma += 2 * (C * Co * w_item + Co * 4)          # weight / bias buffers
        # Single-buffered in-kernel intermediates.
        tmp = th * W * Co * 4                          # y (f32)
        tmp += 4 * th * W * Co * o_item                # y_up (out dtype)
        if not split_store:
            tmp += 4 * th * W * Cout * o_item          # concat temp
        return dma + tmp

    # th == H is always layout-legal (block dim equals full array dim), which
    # covers odd widths where th*W % 8 can never be satisfied otherwise.
    valid = [th for th in range(1, H + 1)
             if H % th == 0 and ((th * W) % 8 == 0 or th == H)]
    fitting = [th for th in valid if bytes_needed(th) <= vmem_budget_bytes]
    best = max(fitting) if fitting else min(valid)

    # Megacore: only shrink TH to create >=2 parallel grid steps on 2-TC chips.
    if multi_tc and N * (H // best) < 2:
        for th in sorted(valid, reverse=True):
            if th < best and N * (H // th) >= 2:
                best = th
                break
    return best


def upsampling_forward_nhwc(x, r, weight_io, bias):
    """Channel-last core.  x: (N,H,W,C), r: (N,2H,2W,Cr), weight_io: (C,Co),
    bias: (Co,).  Returns (N, 2H, 2W, Co+Cr)."""
    N, H, W, C = x.shape
    Co = weight_io.shape[1]
    Cr = r.shape[-1]
    Cout = Co + Cr
    assert r.shape == (N, 2 * H, 2 * W, Cr)

    out_dtype = jnp.result_type(x.dtype, r.dtype)      # don't downcast the skip
    split_store = (Co % 128 == 0)

    vmem_limit = _vmem_limit_bytes()
    vmem_budget = (vmem_limit * 4) // 5                # headroom for Mosaic scratch

    TH = _pick_block_rows(
        N, H, W, C, Co, Cr,
        jnp.dtype(x.dtype).itemsize,
        jnp.dtype(weight_io.dtype).itemsize,
        jnp.dtype(out_dtype).itemsize,
        split_store, _num_tensorcores() > 1, vmem_budget)

    x2 = x.reshape(N, H * W, C)                        # free (contiguous) reshape
    b2 = bias.reshape(1, Co).astype(jnp.float32)

    kernel = functools.partial(upsampling_kernel, split_store=split_store)

    return pl.pallas_call(
        kernel,
        out_shape=jax.ShapeDtypeStruct((N, 2 * H, 2 * W, Cout), out_dtype),
        grid_spec=pltpu.PrefetchScalarGridSpec(
            num_scalar_prefetch=0,
            grid=(N, H // TH),
            in_specs=[
                pl.BlockSpec((1, TH * W, C), lambda n, h: (n, h, 0)),
                # Constant block index -> re-DMA skipped between grid steps.
                pl.BlockSpec((C, Co), lambda n, h: (0, 0)),
                pl.BlockSpec((1, Co), lambda n, h: (0, 0)),
                pl.BlockSpec((1, 2 * TH, 2 * W, Cr), lambda n, h: (n, h, 0, 0)),
            ],
            out_specs=pl.BlockSpec((1, 2 * TH, 2 * W, Cout),
                                   lambda n, h: (n, h, 0, 0)),
        ),
        compiler_params=pltpu.CompilerParams(
            dimension_semantics=("parallel", "parallel"),
            vmem_limit_bytes=vmem_limit),
    )(x2, weight_io, b2, r)


def upsampling_forward(x, r, weight, bias):
    """NCHW boundary matching the PyTorch module.
    x: (N, C, H, W), r: (N, Cr, 2H, 2W), weight: (C//2, C, 1, 1), bias: (C//2,).
    Returns (N, C//2 + Cr, 2H, 2W)."""
    # TODO(synk): these NCHW<->NHWC transposes exist only to match the PyTorch
    # layout; NHWC callers should use upsampling_forward_nhwc directly.
    x_nhwc = jnp.transpose(x, (0, 2, 3, 1))
    r_nhwc = jnp.transpose(r, (0, 2, 3, 1))
    w_io = jnp.transpose(weight[:, :, 0, 0], (1, 0))            # (C, Co)
    out_nhwc = upsampling_forward_nhwc(x_nhwc, r_nhwc, w_io, bias)
    return jnp.transpose(out_nhwc, (0, 3, 1, 2))


if __name__ == "__main__":
    key = jax.random.PRNGKey(0)
    kx, kr, kw, kb = jax.random.split(key, 4)

    N, C, H, W = 2, 4, 16, 16          # in_channel = C
    Co = C // 2                        # conv output channels
    x = jax.random.normal(kx, (N, C, H, W), dtype=jnp.float32)
    r = jax.random.normal(kr, (N, Co, 2 * H, 2 * W), dtype=jnp.float32)

    # Deterministic Conv2d(C, C//2, 1, 1) parameters.
    fan_in = C
    bound = 1.0 / (fan_in ** 0.5)
    weight = jax.random.uniform(kw, (Co, C, 1, 1), jnp.float32, -bound, bound)
    bias = jax.random.uniform(kb, (Co,), jnp.float32, -bound, bound)

    out = jax.block_until_ready(upsampling_forward(x, r, weight, bias))

    # Pure-JAX reference.
    up = jnp.repeat(jnp.repeat(x, 2, axis=2), 2, axis=3)
    y_ref = jnp.einsum('nchw,oc->nohw', up, weight[:, :, 0, 0]) \
        + bias[None, :, None, None]
    ref = jnp.concatenate([y_ref, r], axis=1)

    assert out.shape == (N, Co + Co, 2 * H, 2 * W), out.shape
    assert jnp.allclose(out, ref, atol=1e-5, rtol=1e-5), \
        float(jnp.max(jnp.abs(out - ref)))
    print("KERNEL_OK")
</pallas_src>

<mosaic_0001>
module attributes {stable_mosaic.version = 11 : i64} {
  func.func @upsampling_kernel(%arg0: i32, %arg1: i32, %arg2: memref<1x256x4xf32, #tpu.memory_space<vmem>>, %arg3: memref<4x2xf32, #tpu.memory_space<vmem>>, %arg4: memref<1x2xf32, #tpu.memory_space<vmem>>, %arg5: memref<1x32x32x2xf32, #tpu.memory_space<vmem>>, %arg6: memref<1x32x32x4xf32, #tpu.memory_space<vmem>>) attributes {dimension_semantics = [#tpu.dimension_semantics<parallel>, #tpu.dimension_semantics<parallel>], iteration_bounds = array<i64: 2, 1>, scalar_prefetch = 0 : i64, scratch_operands = 0 : i64, tpu.core_type = #tpu.core_type<tc>, window_params = [{transform_indices = @transform_0, window_bounds = array<i64: 1, 256, 4>}, {pipeline_mode = #tpu.pipeline_mode<synchronous>, transform_indices = @transform_1, window_bounds = array<i64: 4, 2>}, {pipeline_mode = #tpu.pipeline_mode<synchronous>, transform_indices = @transform_2, window_bounds = array<i64: 1, 2>}, {transform_indices = @transform_3, window_bounds = array<i64: 1, 32, 32, 2>}, {transform_indices = @transform_4, window_bounds = array<i64: 1, 32, 32, 4>}]} {
    %c0 = arith.constant 0 : index
    %c0_0 = arith.constant 0 : index
    %c0_1 = arith.constant 0 : index
    %0 = vector.load %arg2[%c0, %c0_0, %c0_1] : memref<1x256x4xf32, #tpu.memory_space<vmem>>, vector<1x256x4xf32>
    %1 = vector.shape_cast %0 : vector<1x256x4xf32> to vector<256x4xf32>
    %c0_2 = arith.constant 0 : index
    %c0_3 = arith.constant 0 : index
    %2 = vector.load %arg3[%c0_2, %c0_3] : memref<4x2xf32, #tpu.memory_space<vmem>>, vector<4x2xf32>
    %cst = arith.constant dense<0.000000e+00> : vector<256x2xf32>
    %3 = tpu.matmul %1, %2, %cst {dimension_numbers = #tpu.dot_dimension_numbers<[1], [0], [0], [1], [0, 0, 1, 1], [], []>} : vector<256x4xf32>, vector<4x2xf32>, vector<256x2xf32> -> vector<256x2xf32>
    %c0_4 = arith.constant 0 : index
    %c0_5 = arith.constant 0 : index
    %4 = vector.load %arg4[%c0_4, %c0_5] : memref<1x2xf32, #tpu.memory_space<vmem>>, vector<1x2xf32>
    %5 = vector.broadcast %4 : vector<1x2xf32> to vector<256x2xf32>
    %6 = arith.addf %3, %5 : vector<256x2xf32>
    %7 = vector.shape_cast %6 : vector<256x2xf32> to vector<16x1x16x1x2xf32>
    %8 = vector.shape_cast %7 : vector<16x1x16x1x2xf32> to vector<16x1x16x1x2xf32>
    %9 = vector.broadcast %8 : vector<16x1x16x1x2xf32> to vector<16x2x16x2x2xf32>
    %10 = vector.shape_cast %9 : vector<16x2x16x2x2xf32> to vector<32x32x2xf32>
    %c0_6 = arith.constant 0 : index
    %c0_7 = arith.constant 0 : index
    %c0_8 = arith.constant 0 : index
    %c0_9 = arith.constant 0 : index
    %11 = vector.load %arg5[%c0_6, %c0_7, %c0_8, %c0_9] : memref<1x32x32x2xf32, #tpu.memory_space<vmem>>, vector<1x32x32x2xf32>
    %12 = vector.shape_cast %11 : vector<1x32x32x2xf32> to vector<32x32x2xf32>
    %13 = tpu.concatenate %10, %12 in 2 : vector<32x32x2xf32>, vector<32x32x2xf32> -> vector<32x32x4xf32>
    %c0_10 = arith.constant 0 : index
    %c0_11 = arith.constant 0 : index
    %c0_12 = arith.constant 0 : index
    %c0_13 = arith.constant 0 : index
    %14 = vector.load %arg6[%c0_10, %c0_11, %c0_12, %c0_13] : memref<1x32x32x4xf32, #tpu.memory_space<vmem>>, vector<1x32x32x4xf32>
    %15 = vector.shape_cast %14 : vector<1x32x32x4xf32> to vector<32x32x4xf32>
    %16 = vector.shape_cast %13 : vector<32x32x4xf32> to vector<1x32x32x4xf32>
    tpu.vector_store %arg6[%c0_10, %c0_11, %c0_12, %c0_13], %16 {strides = array<i32>} : memref<1x32x32x4xf32, #tpu.memory_space<vmem>>, vector<1x32x32x4xf32>,
    return
  }
  func.func @transform_0(%arg0: i32, %arg1: i32) -> (i32, i32, i32) {
    %c0_i32 = arith.constant 0 : i32
    %c0_i32_0 = arith.constant 0 : i32
    return %arg0, %arg1, %c0_i32 : i32, i32, i32
  }
  func.func @transform_1(%arg0: i32, %arg1: i32) -> (i32, i32) {
    %c0_i32 = arith.constant 0 : i32
    %c0_i32_0 = arith.constant 0 : i32
    %c0_i32_1 = arith.constant 0 : i32
    return %c0_i32, %c0_i32_0 : i32, i32
  }
  func.func @transform_2(%arg0: i32, %arg1: i32) -> (i32, i32) {
    %c0_i32 = arith.constant 0 : i32
    %c0_i32_0 = arith.constant 0 : i32
    %c0_i32_1 = arith.constant 0 : i32
    return %c0_i32, %c0_i32_0 : i32, i32
  }
  func.func @transform_3(%arg0: i32, %arg1: i32) -> (i32, i32, i32, i32) {
    %c0_i32 = arith.constant 0 : i32
    %c0_i32_0 = arith.constant 0 : i32
    %c0_i32_1 = arith.constant 0 : i32
    return %arg0, %arg1, %c0_i32, %c0_i32_0 : i32, i32, i32, i32
  }
  func.func @transform_4(%arg0: i32, %arg1: i32) -> (i32, i32, i32, i32) {
    %c0_i32 = arith.constant 0 : i32
    %c0_i32_0 = arith.constant 0 : i32
    %c0_i32_1 = arith.constant 0 : i32
    return %arg0, %arg1, %c0_i32, %c0_i32_0 : i32, i32, i32, i32
  }
}

</mosaic_0001>

<llo_original>
// kernel: tpu_custom_call.1
$region0: #{tpu_custom_call.1}
  #allocation0 [shape = 'u32[]', space=smem, size = 0x4, offset = 0x4, fixed_abs, tag = 'smem constant byte address 0x4 - core index']
  #allocation1 [shape = 'u32[72,128]{1,0:T(1,128)}', space=vmem, size = 0x9000, scoped, tag = 'internal scratch']
  %s0 = inlined_call_operand.vmem [shape: f32[2,256,4], index: 0, kind: input, shape index: {}]
  %s1 = inlined_call_operand.vmem [shape: f32[4,2], index: 1, kind: input, shape index: {}]
  %s2 = inlined_call_operand.vmem [shape: f32[1,2], index: 2, kind: input, shape index: {}]
  %s3 = inlined_call_operand.vmem [shape: f32[2,32,32,2], index: 3, kind: input, shape index: {}]
  %s4 = inlined_call_operand.vmem [shape: f32[2,32,32,4], index: 4, kind: output, shape index: {}]
  %s5 = sld [smem:[#allocation0]]
  $region49: #{tpu_custom_call.1} parent=0
    _
  %s7 = ssub.s32 1, %s5
  %s8 = scalar_select 0, %s7, %s5
  loop: start=0, step=1, limit=4
  $region2: #{tpu_custom_call.1} parent=0 // loop_pre_header
    _
  $region3: #{tpu_custom_call.1} parent=0 // loop_header
    %s10 = sphi 0, %s14
    %p11 = scmp.ge.s32.totalorder %s10, 4
    %s17 = sphi 0, %s29
    %s18 = sphi 0, %s25
    %s19 = sphi 0, %s17
    %s20 = sphi 0, %s18
    %s21 = sphi 0, %s19
    %s22 = sphi 0, %s20
    %s34 = sphi 0, %s36
    %s37 = sphi 0, %s34
    %s38 = sphi 0, %s37
    %s54 = sphi 0, %s38
    %s58 = sphi 0, %s58
    %s60 = sphi 0, %s58
    %s61 = sphi 0, %s60
    %s75 = sphi 0, %s61
    %s79 = sphi 0, %s79
    %s81 = sphi 0, %s79
    %s82 = sphi 0, %s81
    %s96 = sphi 0, %s82
    %s104 = sphi 0, %s106
    %s107 = sphi 0, %s104
    %s108 = sphi 0, %s107
    %s124 = sphi 0, %s108
    %s132 = sphi 0, %s134
    %s135 = sphi 0, %s132
    %s136 = sphi 0, %s135
    %s152 = sphi 0, %s136
  $region4: #{tpu_custom_call.1} parent=0 // loop_header_branch
    %13 = sbr.rel (%p11) target = $region8
  $region5: #{tpu_custom_call.1} parent=0 // loop_body
    %s15 = ssub.s32 %s10, 1
    %s16 = ssub.s32 %s10, 2
    %s23 = sadd.s32 1, %s18
    %p24 = scmp.ge.s32.totalorder %s23, 1
    %s25 = scalar_select %p24, 0, %s23
    %s26 = sadd.s32 1, %s17
    %s27 = scalar_select %p24, %s26, %s17
    %p28 = scmp.ge.s32.totalorder %s27, 2
    %s29 = scalar_select %p28, 0, %s27
    %s30 = ssub.s32 %s17, %s29
    %s31 = ssub.s32 %s18, %s25
    %s32 = sor.u32 %s30, %s31
    %p33 = scmp.eq.s32.totalorder %s32, 0
    %s35 = sadd.s32 %s34, 1
    %s36 = scalar_select %p33, %s34, %s35
    %p39 = pneg %p33
    %p40 = scmp.eq.s32.totalorder %s10, 1
    %p41 = por %p39, %p40
    %p42 = scmp.ne.s32.totalorder %s34, %s37
    %p43 = scmp.eq.s32.totalorder %s10, 0
    %p44 = por %p42, %p43
    %p45 = scmp.ne.s32.totalorder %s34, %s37
    %p46 = scmp.eq.s32.totalorder %s15, 1
    %p47 = por %p45, %p46
    %p48 = scmp.ne.s32.totalorder %s37, %s38
    %p49 = scmp.eq.s32.totalorder %s15, 0
    %p50 = por %p48, %p49
    %p51 = scmp.ne.s32.totalorder %s37, %s38
    %p52 = scmp.eq.s32.totalorder %s16, 1
    %p53 = por %p51, %p52
    %p55 = scmp.ne.s32.totalorder %s38, %s54
    %p56 = scmp.eq.s32.totalorder %s16, 0
    %p57 = por %p55, %p56
    %s59 = sadd.s32 %s58, 1
    %p62 = scmp.eq.s32.totalorder %s10, 1
    %p63 = scmp.ne.s32.totalorder %s58, %s60
    %p64 = scmp.eq.s32.totalorder %s10, 0
    %p65 = por %p63, %p64
    %p66 = scmp.ne.s32.totalorder %s58, %s60
    %p67 = scmp.eq.s32.totalorder %s15, 1
    %p68 = por %p66, %p67
    %p69 = scmp.ne.s32.totalorder %s60, %s61
    %p70 = scmp.eq.s32.totalorder %s15, 0
    %p71 = por %p69, %p70
    %p72 = scmp.ne.s32.totalorder %s60, %s61
    %p73 = scmp.eq.s32.totalorder %s16, 1
    %p74 = por %p72, %p73
    %p76 = scmp.ne.s32.totalorder %s61, %s75
    %p77 = scmp.eq.s32.totalorder %s16, 0
    %p78 = por %p76, %p77
    %s80 = sadd.s32 %s79, 1
    %p83 = scmp.eq.s32.totalorder %s10, 1
    %p84 = scmp.ne.s32.totalorder %s79, %s81
    %p85 = scmp.eq.s32.totalorder %s10, 0
    %p86 = por %p84, %p85
    %p87 = scmp.ne.s32.totalorder %s79, %s81
    %p88 = scmp.eq.s32.totalorder %s15, 1
    %p89 = por %p87, %p88
    %p90 = scmp.ne.s32.totalorder %s81, %s82
    %p91 = scmp.eq.s32.totalorder %s15, 0
    %p92 = por %p90, %p91
    %p93 = scmp.ne.s32.totalorder %s81, %s82
    %p94 = scmp.eq.s32.totalorder %s16, 1
    %p95 = por %p93, %p94
    %p97 = scmp.ne.s32.totalorder %s82, %s96
    %p98 = scmp.eq.s32.totalorder %s16, 0
    %p99 = por %p97, %p98
    %s100 = ssub.s32 %s17, %s29
    %s101 = ssub.s32 %s18, %s25
    %s102 = sor.u32 %s100, %s101
    %p103 = scmp.eq.s32.totalorder %s102, 0
    %s105 = sadd.s32 %s104, 1
    %s106 = scalar_select %p103, %s104, %s105
    %p109 = pneg %p103
    %p110 = scmp.eq.s32.totalorder %s10, 1
    %p111 = por %p109, %p110
    %p112 = scmp.ne.s32.totalorder %s104, %s107
    %p113 = scmp.eq.s32.totalorder %s10, 0
    %p114 = por %p112, %p113
    %p115 = scmp.ne.s32.totalorder %s104, %s107
    %p116 = scmp.eq.s32.totalorder %s15, 1
    %p117 = por %p115, %p116
    %p118 = scmp.ne.s32.totalorder %s107, %s108
    %p119 = scmp.eq.s32.totalorder %s15, 0
    %p120 = por %p118, %p119
    %p121 = scmp.ne.s32.totalorder %s107, %s108
    %p122 = scmp.eq.s32.totalorder %s16, 1
    %p123 = por %p121, %p122
    %p125 = scmp.ne.s32.totalorder %s108, %s124
    %p126 = scmp.eq.s32.totalorder %s16, 0
    %p127 = por %p125, %p126
    %s128 = ssub.s32 %s17, %s29
    %s129 = ssub.s32 %s18, %s25
    %s130 = sor.u32 %s128, %s129
    %p131 = scmp.eq.s32.totalorder %s130, 0
    %s133 = sadd.s32 %s132, 1
    %s134 = scalar_select %p131, %s132, %s133
    %p137 = pneg %p131
    %p138 = scmp.eq.s32.totalorder %s10, 1
    %p139 = por %p137, %p138
    %p140 = scmp.ne.s32.totalorder %s132, %s135
    %p141 = scmp.eq.s32.totalorder %s10, 0
    %p142 = por %p140, %p141
    %p143 = scmp.ne.s32.totalorder %s132, %s135
    %p144 = scmp.eq.s32.totalorder %s15, 1
    %p145 = por %p143, %p144
    %p146 = scmp.ne.s32.totalorder %s135, %s136
    %p147 = scmp.eq.s32.totalorder %s15, 0
    %p148 = por %p146, %p147
    %p149 = scmp.ne.s32.totalorder %s135, %s136
    %p150 = scmp.eq.s32.totalorder %s16, 1
    %p151 = por %p149, %p150
    %p153 = scmp.ne.s32.totalorder %s136, %s152
    %p154 = scmp.eq.s32.totalorder %s16, 0
    %p155 = por %p153, %p154
    %p156 = scmp.le.s32.totalorder 1, %s10
    %p157 = scmp.lt.s32.totalorder %s10, 3
    %p158 = pnand %p156, %p157
    %p159 = pneg %p158
    // Predicated region
    $region9: #{tpu_custom_call.1} parent=5 // pred_check
      _
    $region10: #{tpu_custom_call.1} parent=5 // pred_check_branch
      %161 = sbr.rel (%p158) target = $region12
    $region11: #{tpu_custom_call.1} parent=5 // pred_region
      %s162 = ssub.s32 %s10, 1
      // Predicated region
      $region13: #{tpu_custom_call.1} parent=11 // pred_check
        %p163 = pneg %p71
      $region14: #{tpu_custom_call.1} parent=11 // pred_check_branch
        %165 = sbr.rel (%p163) target = $region16
      $region15: #{tpu_custom_call.1} parent=11 // pred_region
        _
      $region16: #{tpu_custom_call.1} parent=11 // pred_fallthru
        _
      // Predicated region
      $region17: #{tpu_custom_call.1} parent=11 // pred_check
        %p166 = pneg %p92
      $region18: #{tpu_custom_call.1} parent=11 // pred_check_branch
        %168 = sbr.rel (%p166) target = $region20
      $region19: #{tpu_custom_call.1} parent=11 // pred_region
        _
      $region20: #{tpu_custom_call.1} parent=11 // pred_fallthru
        _
    $region12: #{tpu_custom_call.1} parent=5 // pred_fallthru
      _
    %p169 = scmp.lt.s32.totalorder %s10, 2
    // Predicated region
    $region21: #{tpu_custom_call.1} parent=5 // pred_check
      %p170 = pneg %p169
    $region22: #{tpu_custom_call.1} parent=5 // pred_check_branch
      %172 = sbr.rel (%p170) target = $region24
    $region23: #{tpu_custom_call.1} parent=5 // pred_region
      // Predicated region
      $region25: #{tpu_custom_call.1} parent=23 // pred_check
        %p173 = pneg %p44
      $region26: #{tpu_custom_call.1} parent=23 // pred_check_branch
        %175 = sbr.rel (%p173) target = $region28
      $region27: #{tpu_custom_call.1} parent=23 // pred_region
        %s176 = smul.u32 32, %s18
        %p177 = scmp.lt.s32.totalorder %s17, 1
        %s178 = scalar_select %p177, %s17, 1
        %p179 = scmp.lt.s32.totalorder %s176, 31
        %s180 = scalar_select %p179, %s176, 31
        %s181 = smul.addr %s178, 32
        %s182 = sadd.s32 %s180, %s181
        %s183 = smul.addr %s182, 8
        %s184 = scalar_lea.vmem %s0, %s183
        %s185 = smul.u32 32, %s18
      $region28: #{tpu_custom_call.1} parent=23 // pred_fallthru
        _
      // Predicated region
      $region29: #{tpu_custom_call.1} parent=23 // pred_check
        %p186 = pneg %p114
      $region30: #{tpu_custom_call.1} parent=23 // pred_check_branch
        %188 = sbr.rel (%p186) target = $region32
      $region31: #{tpu_custom_call.1} parent=23 // pred_region
        %s189 = smul.u32 32, %s18
        %p190 = scmp.lt.s32.totalorder %s17, 1
        %s191 = scalar_select %p190, %s17, 1
        %p192 = scmp.lt.s32.totalorder %s189, 31
        %s193 = scalar_select %p192, %s189, 31
        %s194 = smul.addr %s193, 4
        %s195 = smul.addr %s191, 128
        %s196 = sadd.s32 %s194, %s195
        %s197 = smul.addr %s196, 8
        %s198 = scalar_lea.vmem %s3, %s197
        %s199 = smul.u32 32, %s18
      $region32: #{tpu_custom_call.1} parent=23 // pred_fallthru
        _
    $region24: #{tpu_custom_call.1} parent=5 // pred_fallthru
      _
    %p200 = scmp.le.s32.totalorder 1, %s10
    %p201 = scmp.lt.s32.totalorder %s10, 3
    %p202 = pnand %p200, %p201
    %p203 = pneg %p202
    // Predicated region
    $region33: #{tpu_custom_call.1} parent=5 // pred_check
      _
    $region34: #{tpu_custom_call.1} parent=5 // pred_check_branch
      %205 = sbr.rel (%p202) target = $region36
    $region35: #{tpu_custom_call.1} parent=5 // pred_region
      %s206 = ssub.s32 %s10, 1
      %s207 = smul.u32 32, %s20
      %p208 = scmp.lt.s32.totalorder %s19, 1
      %s209 = scalar_select %p208, %s19, 1
      %p210 = scmp.lt.s32.totalorder %s207, 31
      %s211 = scalar_select %p210, %s207, 31
      %s212 = smul.addr %s209, 32
      %s213 = sadd.s32 %s211, %s212
      %s214 = smul.addr %s213, 8
      %s215 = scalar_lea.vmem %s0, %s214
      %p216 = pneg %p50
      %p217 = pneg %p47
      %p218 = pneg %p71
      %p219 = pneg %p68
      %p220 = pneg %p92
      %p221 = pneg %p89
      %s222 = smul.u32 32, %s20
      %p223 = scmp.lt.s32.totalorder %s19, 1
      %s224 = scalar_select %p223, %s19, 1
      %p225 = scmp.lt.s32.totalorder %s222, 31
      %s226 = scalar_select %p225, %s222, 31
      %s227 = smul.addr %s226, 4
      %s228 = smul.addr %s224, 128
      %s229 = sadd.s32 %s227, %s228
      %s230 = smul.addr %s229, 8
      %s231 = scalar_lea.vmem %s3, %s230
      %p232 = pneg %p120
      %p233 = pneg %p117
      %p234 = pneg %p148
      %p235 = pneg %p145
      %s236 = smul.u32 32, %s20
      %p237 = scmp.lt.s32.totalorder %s19, 1
      %s238 = scalar_select %p237, %s19, 1
      %p239 = scmp.lt.s32.totalorder %s236, 31
      %s240 = scalar_select %p239, %s236, 31
      %s241 = smul.addr %s240, 4
      %s242 = smul.addr %s238, 128
      %s243 = sadd.s32 %s241, %s242
      %s244 = smul.addr %s243, 8
      %s245 = scalar_lea.vmem %s4, %s244
      %s246 = smul.u32 32, %s20
      %p247 = scmp.lt.s32.totalorder %s19, 1
      %s248 = scalar_select %p247, %s19, 1
      %p249 = scmp.lt.s32.totalorder %s246, 31
      %s250 = scalar_select %p249, %s246, 31
      %s251 = smul.addr %s248, 32
      %s252 = sadd.s32 %s250, %s251
      %s253 = smul.addr %s252, 8
      %s254 = scalar_lea.vmem %s0, %s253
      %s255 = smul.u32 32, %s20
      %s256 = smul.u32 32, %s20
      %p257 = scmp.lt.s32.totalorder %s19, 1
      %s258 = scalar_select %p257, %s19, 1
      %p259 = scmp.lt.s32.totalorder %s256, 31
      %s260 = scalar_select %p259, %s256, 31
      %s261 = smul.addr %s260, 4
      %s262 = smul.addr %s258, 128
      %s263 = sadd.s32 %s261, %s262
      %s264 = smul.addr %s263, 8
      %s265 = scalar_lea.vmem %s3, %s264
      %s266 = smul.u32 32, %s20
      %s267 = smul.u32 32, %s20
      %p268 = scmp.lt.s32.totalorder %s19, 1
      %s269 = scalar_select %p268, %s19, 1
      %p270 = scmp.lt.s32.totalorder %s267, 31
      %s271 = scalar_select %p270, %s267, 31
      %s272 = smul.addr %s271, 4
      %s273 = smul.addr %s269, 128
      %s274 = sadd.s32 %s272, %s273
      %s275 = smul.addr %s274, 8
      %s276 = scalar_lea.vmem %s4, %s275
      %s277 = smul.u32 32, %s20
      %v278 = vld [vmem:[%s254] sm:$0xff]
      %v279 = vld [vmem:[%s254 + $0x8] sm:$0xff]
      %v280 = vld [vmem:[%s254 + $0x10] sm:$0xff]
      %v281 = vld [vmem:[%s254 + $0x18] sm:$0xff]
      %v282 = vld [vmem:[%s254 + $0x20] sm:$0xff]
      %v283 = vld [vmem:[%s254 + $0x28] sm:$0xff]
      %v284 = vld [vmem:[%s254 + $0x30] sm:$0xff]
      %v285 = vld [vmem:[%s254 + $0x38] sm:$0xff]
      %v286 = vld [vmem:[%s254 + $0x40] sm:$0xff]
      %v287 = vld [vmem:[%s254 + $0x48] sm:$0xff]
      %v288 = vld [vmem:[%s254 + $0x50] sm:$0xff]
      %v289 = vld [vmem:[%s254 + $0x58] sm:$0xff]
      %v290 = vld [vmem:[%s254 + $0x60] sm:$0xff]
      %v291 = vld [vmem:[%s254 + $0x68] sm:$0xff]
      %v292 = vld [vmem:[%s254 + $0x70] sm:$0xff]
      %v293 = vld [vmem:[%s254 + $0x78] sm:$0xff]
      %v294 = vld [vmem:[%s254 + $0x80] sm:$0xff]
      %v295 = vld [vmem:[%s254 + $0x88] sm:$0xff]
      %v296 = vld [vmem:[%s254 + $0x90] sm:$0xff]
      %v297 = vld [vmem:[%s254 + $0x98] sm:$0xff]
      %v298 = vld [vmem:[%s254 + $0xa0] sm:$0xff]
      %v299 = vld [vmem:[%s254 + $0xa8] sm:$0xff]
      %v300 = vld [vmem:[%s254 + $0xb0] sm:$0xff]
      %v301 = vld [vmem:[%s254 + $0xb8] sm:$0xff]
      %v302 = vld [vmem:[%s254 + $0xc0] sm:$0xff]
      %v303 = vld [vmem:[%s254 + $0xc8] sm:$0xff]
      %v304 = vld [vmem:[%s254 + $0xd0] sm:$0xff]
      %v305 = vld [vmem:[%s254 + $0xd8] sm:$0xff]
      %v306 = vld [vmem:[%s254 + $0xe0] sm:$0xff]
      %v307 = vld [vmem:[%s254 + $0xe8] sm:$0xff]
      %v308 = vld [vmem:[%s254 + $0xf0] sm:$0xff]
      %v309 = vld [vmem:[%s254 + $0xf8] sm:$0xff]
      %v310 = vld [vmem:[%s1] sm:$0xf]
      %v311 = vld [vmem:[%s2] sm:$0x1]
      %v313 = vperm.slane %v311, 0
      %vm315 = vcmask 31744
      %v317 = vsel %vm315, %v278, 0
      %v320 = vsel %vm315, %v279, 0
      %v323 = vsel %vm315, %v280, 0
      %v326 = vsel %vm315, %v281, 0
      %v329 = vsel %vm315, %v282, 0
      %v332 = vsel %vm315, %v283, 0
      %v335 = vsel %vm315, %v284, 0
      %v338 = vsel %vm315, %v285, 0
      %v341 = vsel %vm315, %v286, 0
      %v344 = vsel %vm315, %v287, 0
      %v347 = vsel %vm315, %v288, 0
      %v350 = vsel %vm315, %v289, 0
      %v353 = vsel %vm315, %v290, 0
      %v356 = vsel %vm315, %v291, 0
      %v359 = vsel %vm315, %v292, 0
      %v362 = vsel %vm315, %v293, 0
      %v365 = vsel %vm315, %v294, 0
      %v368 = vsel %vm315, %v295, 0
      %v371 = vsel %vm315, %v296, 0
      %v374 = vsel %vm315, %v297, 0
      %v377 = vsel %vm315, %v298, 0
      %v380 = vsel %vm315, %v299, 0
      %v383 = vsel %vm315, %v300, 0
      %v386 = vsel %vm315, %v301, 0
      %v389 = vsel %vm315, %v302, 0
      %v392 = vsel %vm315, %v303, 0
      %v395 = vsel %vm315, %v304, 0
      %v398 = vsel %vm315, %v305, 0
      %v401 = vsel %vm315, %v306, 0
      %v404 = vsel %vm315, %v307, 0
      %v407 = vsel %vm315, %v308, 0
      %v410 = vsel %vm315, %v309, 0
      %vm412 = vcmask 1043456
      %v414 = vsel %vm412, %v310, 0
      %416 = vmatpush.msra.mxu0 0.0
      %417 = vmatpush.msra.mxu0 0.0
      %418 = vmatpush.msra.mxu0 0.0
      %419 = vmatpush.msra.mxu0 0.0
      %420 = vmatpush.msra.mxu0 0.0
      %421 = vmatpush.msra.mxu0 0.0
      %422 = vmatpush.msra.mxu0 0.0
      %423 = vmatpush.msra.mxu0 0.0
      %424 = vmatpush.msra.mxu0 0.0
      %425 = vmatpush.msra.mxu0 0.0
      %426 = vmatpush.msra.mxu0 0.0
      %427 = vmatpush.msra.mxu0 0.0
      %428 = vmatpush.msra.mxu0 0.0
      %429 = vmatpush.msra.mxu0 0.0
      %430 = vmatpush.msra.mxu0 0.0
      %431 = vmatpush.msra.mxu0 %v414
      %432 = vmatmul.f32.gmra.mxu0 %v317
      %v433 = vpop.f32.mrf.mxu0
      %v434 = vadd.f32 %v313, %v433
      %435 = vmatmul.f32.gmra.mxu0 %v320
      %v436 = vpop.f32.mrf.mxu0
      %v437 = vadd.f32 %v313, %v436
      %438 = vmatmul.f32.gmra.mxu0 %v323
      %v439 = vpop.f32.mrf.mxu0
      %v440 = vadd.f32 %v313, %v439
      %441 = vmatmul.f32.gmra.mxu0 %v326
      %v442 = vpop.f32.mrf.mxu0
      %v443 = vadd.f32 %v313, %v442
      %444 = vmatmul.f32.gmra.mxu0 %v329
      %v445 = vpop.f32.mrf.mxu0
      %v446 = vadd.f32 %v313, %v445
      %447 = vmatmul.f32.gmra.mxu0 %v332
      %v448 = vpop.f32.mrf.mxu0
      %v449 = vadd.f32 %v313, %v448
      %450 = vmatmul.f32.gmra.mxu0 %v335
      %v451 = vpop.f32.mrf.mxu0
      %v452 = vadd.f32 %v313, %v451
      %453 = vmatmul.f32.gmra.mxu0 %v338
      %v454 = vpop.f32.mrf.mxu0
      %v455 = vadd.f32 %v313, %v454
      %456 = vmatmul.f32.gmra.mxu0 %v341
      %v457 = vpop.f32.mrf.mxu0
      %v458 = vadd.f32 %v313, %v457
      %459 = vmatmul.f32.gmra.mxu0 %v344
      %v460 = vpop.f32.mrf.mxu0
      %v461 = vadd.f32 %v313, %v460
      %462 = vmatmul.f32.gmra.mxu0 %v347
      %v463 = vpop.f32.mrf.mxu0
      %v464 = vadd.f32 %v313, %v463
      %465 = vmatmul.f32.gmra.mxu0 %v350
      %v466 = vpop.f32.mrf.mxu0
      %v467 = vadd.f32 %v313, %v466
      %468 = vmatmul.f32.gmra.mxu0 %v353
      %v469 = vpop.f32.mrf.mxu0
      %v470 = vadd.f32 %v313, %v469
      %471 = vmatmul.f32.gmra.mxu0 %v356
      %v472 = vpop.f32.mrf.mxu0
      %v473 = vadd.f32 %v313, %v472
      %474 = vmatmul.f32.gmra.mxu0 %v359
      %v475 = vpop.f32.mrf.mxu0
      %v476 = vadd.f32 %v313, %v475
      %477 = vmatmul.f32.gmra.mxu0 %v362
      %v478 = vpop.f32.mrf.mxu0
      %v479 = vadd.f32 %v313, %v478
      %480 = vmatmul.f32.gmra.mxu0 %v365
      %v481 = vpop.f32.mrf.mxu0
      %v482 = vadd.f32 %v313, %v481
      %483 = vmatmul.f32.gmra.mxu0 %v368
      %v484 = vpop.f32.mrf.mxu0
      %v485 = vadd.f32 %v313, %v484
      %486 = vmatmul.f32.gmra.mxu0 %v371
      %v487 = vpop.f32.mrf.mxu0
      %v488 = vadd.f32 %v313, %v487
      %489 = vmatmul.f32.gmra.mxu0 %v374
      %v490 = vpop.f32.mrf.mxu0
      %v491 = vadd.f32 %v313, %v490
      %492 = vmatmul.f32.gmra.mxu0 %v377
      %v493 = vpop.f32.mrf.mxu0
      %v494 = vadd.f32 %v313, %v493
      %495 = vmatmul.f32.gmra.mxu0 %v380
      %v496 = vpop.f32.mrf.mxu0
      %v497 = vadd.f32 %v313, %v496
      %498 = vmatmul.f32.gmra.mxu0 %v383
      %v499 = vpop.f32.mrf.mxu0
      %v500 = vadd.f32 %v313, %v499
      %501 = vmatmul.f32.gmra.mxu0 %v386
      %v502 = vpop.f32.mrf.mxu0
      %v503 = vadd.f32 %v313, %v502
      %504 = vmatmul.f32.gmra.mxu0 %v389
      %v505 = vpop.f32.mrf.mxu0
      %v506 = vadd.f32 %v313, %v505
      %507 = vmatmul.f32.gmra.mxu0 %v392
      %v508 = vpop.f32.mrf.mxu0
      %v509 = vadd.f32 %v313, %v508
      %510 = vmatmul.f32.gmra.mxu0 %v395
      %v511 = vpop.f32.mrf.mxu0
      %v512 = vadd.f32 %v313, %v511
      %513 = vmatmul.f32.gmra.mxu0 %v398
      %v514 = vpop.f32.mrf.mxu0
      %v515 = vadd.f32 %v313, %v514
      %516 = vmatmul.f32.gmra.mxu0 %v401
      %v517 = vpop.f32.mrf.mxu0
      %v518 = vadd.f32 %v313, %v517
      %519 = vmatmul.f32.gmra.mxu0 %v404
      %v520 = vpop.f32.mrf.mxu0
      %v521 = vadd.f32 %v313, %v520
      %522 = vmatmul.f32.gmra.mxu0 %v407
      %v523 = vpop.f32.mrf.mxu0
      %v524 = vadd.f32 %v313, %v523
      %525 = vmatmul.f32.gmra.mxu0 %v410
      %v526 = vpop.f32.mrf.mxu0
      %v527 = vadd.f32 %v313, %v526
      %528 = vdwg.mxu0
      %v561 = vrot.slane %v434, 1
      %v562 = vrot.slane %v434, 2
      %v563 = vrot.slane %v434, 3
      %v564 = vrot.slane %v434, 4
      %v565 = vrot.slane %v434, 5
      %v566 = vrot.slane %v434, 6
      %v567 = vrot.slane %v434, 7
      %v568 = vrot.slane %v437, 1
      %v569 = vrot.slane %v437, 2
      %v570 = vrot.slane %v437, 3
      %v571 = vrot.slane %v437, 4
      %v572 = vrot.slane %v437, 5
      %v573 = vrot.slane %v437, 6
      %v574 = vrot.slane %v437, 7
      %v575 = vrot.slane %v440, 1
      %v576 = vrot.slane %v440, 2
      %v577 = vrot.slane %v440, 3
      %v578 = vrot.slane %v440, 4
      %v579 = vrot.slane %v440, 5
      %v580 = vrot.slane %v440, 6
      %v581 = vrot.slane %v440, 7
      %v582 = vrot.slane %v443, 1
      %v583 = vrot.slane %v443, 2
      %v584 = vrot.slane %v443, 3
      %v585 = vrot.slane %v443, 4
      %v586 = vrot.slane %v443, 5
      %v587 = vrot.slane %v443, 6
      %v588 = vrot.slane %v443, 7
      %v589 = vrot.slane %v446, 1
      %v590 = vrot.slane %v446, 2
      %v591 = vrot.slane %v446, 3
      %v592 = vrot.slane %v446, 4
      %v593 = vrot.slane %v446, 5
      %v594 = vrot.slane %v446, 6
      %v595 = vrot.slane %v446, 7
      %v596 = vrot.slane %v449, 1
      %v597 = vrot.slane %v449, 2
      %v598 = vrot.slane %v449, 3
      %v599 = vrot.slane %v449, 4
      %v600 = vrot.slane %v449, 5
      %v601 = vrot.slane %v449, 6
      %v602 = vrot.slane %v449, 7
      %v603 = vrot.slane %v452, 1
      %v604 = vrot.slane %v452, 2
      %v605 = vrot.slane %v452, 3
      %v606 = vrot.slane %v452, 4
      %v607 = vrot.slane %v452, 5
      %v608 = vrot.slane %v452, 6
      %v609 = vrot.slane %v452, 7
      %v610 = vrot.slane %v455, 1
      %v611 = vrot.slane %v455, 2
      %v612 = vrot.slane %v455, 3
      %v613 = vrot.slane %v455, 4
      %v614 = vrot.slane %v455, 5
      %v615 = vrot.slane %v455, 6
      %v616 = vrot.slane %v455, 7
      %v617 = vrot.slane %v458, 1
      %v618 = vrot.slane %v458, 2
      %v619 = vrot.slane %v458, 3
      %v620 = vrot.slane %v458, 4
      %v621 = vrot.slane %v458, 5
      %v622 = vrot.slane %v458, 6
      %v623 = vrot.slane %v458, 7
      %v624 = vrot.slane %v461, 1
      %v625 = vrot.slane %v461, 2
      %v626 = vrot.slane %v461, 3
      %v627 = vrot.slane %v461, 4
      %v628 = vrot.slane %v461, 5
      %v629 = vrot.slane %v461, 6
      %v630 = vrot.slane %v461, 7
      %v631 = vrot.slane %v464, 1
      %v632 = vrot.slane %v464, 2
      %v633 = vrot.slane %v464, 3
      %v634 = vrot.slane %v464, 4
      %v635 = vrot.slane %v464, 5
      %v636 = vrot.slane %v464, 6
      %v637 = vrot.slane %v464, 7
      %v638 = vrot.slane %v467, 1
      %v639 = vrot.slane %v467, 2
      %v640 = vrot.slane %v467, 3
      %v641 = vrot.slane %v467, 4
      %v642 = vrot.slane %v467, 5
      %v643 = vrot.slane %v467, 6
      %v644 = vrot.slane %v467, 7
      %v645 = vrot.slane %v470, 1
      %v646 = vrot.slane %v470, 2
      %v647 = vrot.slane %v470, 3
      %v648 = vrot.slane %v470, 4
      %v649 = vrot.slane %v470, 5
      %v650 = vrot.slane %v470, 6
      %v651 = vrot.slane %v470, 7
      %v652 = vrot.slane %v473, 1
      %v653 = vrot.slane %v473, 2
      %v654 = vrot.slane %v473, 3
      %v655 = vrot.slane %v473, 4
      %v656 = vrot.slane %v473, 5
      %v657 = vrot.slane %v473, 6
      %v658 = vrot.slane %v473, 7
      %v659 = vrot.slane %v476, 1
      %v660 = vrot.slane %v476, 2
      %v661 = vrot.slane %v476, 3
      %v662 = vrot.slane %v476, 4
      %v663 = vrot.slane %v476, 5
      %v664 = vrot.slane %v476, 6
      %v665 = vrot.slane %v476, 7
      %v666 = vrot.slane %v479, 1
      %v667 = vrot.slane %v479, 2
      %v668 = vrot.slane %v479, 3
      %v669 = vrot.slane %v479, 4
      %v670 = vrot.slane %v479, 5
      %v671 = vrot.slane %v479, 6
      %v672 = vrot.slane %v479, 7
      %v673 = vrot.slane %v482, 1
      %v674 = vrot.slane %v482, 2
      %v675 = vrot.slane %v482, 3
      %v676 = vrot.slane %v482, 4
      %v677 = vrot.slane %v482, 5
      %v678 = vrot.slane %v482, 6
      %v679 = vrot.slane %v482, 7
      %v680 = vrot.slane %v485, 1
      %v681 = vrot.slane %v485, 2
      %v682 = vrot.slane %v485, 3
      %v683 = vrot.slane %v485, 4
      %v684 = vrot.slane %v485, 5
      %v685 = vrot.slane %v485, 6
      %v686 = vrot.slane %v485, 7
      %v687 = vrot.slane %v488, 1
      %v688 = vrot.slane %v488, 2
      %v689 = vrot.slane %v488, 3
      %v690 = vrot.slane %v488, 4
      %v691 = vrot.slane %v488, 5
      %v692 = vrot.slane %v488, 6
      %v693 = vrot.slane %v488, 7
      %v694 = vrot.slane %v491, 1
      %v695 = vrot.slane %v491, 2
      %v696 = vrot.slane %v491, 3
      %v697 = vrot.slane %v491, 4
      %v698 = vrot.slane %v491, 5
      %v699 = vrot.slane %v491, 6
      %v700 = vrot.slane %v491, 7
      %v701 = vrot.slane %v494, 1
      %v702 = vrot.slane %v494, 2
      %v703 = vrot.slane %v494, 3
      %v704 = vrot.slane %v494, 4
      %v705 = vrot.slane %v494, 5
      %v706 = vrot.slane %v494, 6
      %v707 = vrot.slane %v494, 7
      %v708 = vrot.slane %v497, 1
      %v709 = vrot.slane %v497, 2
      %v710 = vrot.slane %v497, 3
      %v711 = vrot.slane %v497, 4
      %v712 = vrot.slane %v497, 5
      %v713 = vrot.slane %v497, 6
      %v714 = vrot.slane %v497, 7
      %v715 = vrot.slane %v500, 1
      %v716 = vrot.slane %v500, 2
      %v717 = vrot.slane %v500, 3
      %v718 = vrot.slane %v500, 4
      %v719 = vrot.slane %v500, 5
      %v720 = vrot.slane %v500, 6
      %v721 = vrot.slane %v500, 7
      %v722 = vrot.slane %v503, 1
      %v723 = vrot.slane %v503, 2
      %v724 = vrot.slane %v503, 3
      %v725 = vrot.slane %v503, 4
      %v726 = vrot.slane %v503, 5
      %v727 = vrot.slane %v503, 6
      %v728 = vrot.slane %v503, 7
      %v729 = vrot.slane %v506, 1
      %v730 = vrot.slane %v506, 2
      %v731 = vrot.slane %v506, 3
      %v732 = vrot.slane %v506, 4
      %v733 = vrot.slane %v506, 5
      %v734 = vrot.slane %v506, 6
      %v735 = vrot.slane %v506, 7
      %v736 = vrot.slane %v509, 1
      %v737 = vrot.slane %v509, 2
      %v738 = vrot.slane %v509, 3
      %v739 = vrot.slane %v509, 4
      %v740 = vrot.slane %v509, 5
      %v741 = vrot.slane %v509, 6
      %v742 = vrot.slane %v509, 7
      %v743 = vrot.slane %v512, 1
      %v744 = vrot.slane %v512, 2
      %v745 = vrot.slane %v512, 3
      %v746 = vrot.slane %v512, 4
      %v747 = vrot.slane %v512, 5
      %v748 = vrot.slane %v512, 6
      %v749 = vrot.slane %v512, 7
      %v750 = vrot.slane %v515, 1
      %v751 = vrot.slane %v515, 2
      %v752 = vrot.slane %v515, 3
      %v753 = vrot.slane %v515, 4
      %v754 = vrot.slane %v515, 5
      %v755 = vrot.slane %v515, 6
      %v756 = vrot.slane %v515, 7
      %v757 = vrot.slane %v518, 1
      %v758 = vrot.slane %v518, 2
      %v759 = vrot.slane %v518, 3
      %v760 = vrot.slane %v518, 4
      %v761 = vrot.slane %v518, 5
      %v762 = vrot.slane %v518, 6
      %v763 = vrot.slane %v518, 7
      %v764 = vrot.slane %v521, 1
      %v765 = vrot.slane %v521, 2
      %v766 = vrot.slane %v521, 3
      %v767 = vrot.slane %v521, 4
      %v768 = vrot.slane %v521, 5
      %v769 = vrot.slane %v521, 6
      %v770 = vrot.slane %v521, 7
      %v771 = vrot.slane %v524, 1
      %v772 = vrot.slane %v524, 2
      %v773 = vrot.slane %v524, 3
      %v774 = vrot.slane %v524, 4
      %v775 = vrot.slane %v524, 5
      %v776 = vrot.slane %v524, 6
      %v777 = vrot.slane %v524, 7
      %v778 = vrot.slane %v527, 1
      %v779 = vrot.slane %v527, 2
      %v780 = vrot.slane %v527, 3
      %v781 = vrot.slane %v527, 4
      %v782 = vrot.slane %v527, 5
      %v783 = vrot.slane %v527, 6
      %v784 = vrot.slane %v527, 7
      %v785 = vperm.slane %v434, 0
      %v786 = vperm.slane %v561, 0
      %v787 = vperm.slane %v562, 0
      %v788 = vperm.slane %v563, 0
      %v789 = vperm.slane %v564, 0
      %v790 = vperm.slane %v565, 0
      %v791 = vperm.slane %v566, 0
      %v792 = vperm.slane %v567, 0
      %v793 = vperm.slane %v437, 0
      %v794 = vperm.slane %v568, 0
      %v795 = vperm.slane %v569, 0
      %v796 = vperm.slane %v570, 0
      %v797 = vperm.slane %v571, 0
      %v798 = vperm.slane %v572, 0
      %v799 = vperm.slane %v573, 0
      %v800 = vperm.slane %v574, 0
      %v801 = vperm.slane %v440, 0
      %v802 = vperm.slane %v575, 0
      %v803 = vperm.slane %v576, 0
      %v804 = vperm.slane %v577, 0
      %v805 = vperm.slane %v578, 0
      %v806 = vperm.slane %v579, 0
      %v807 = vperm.slane %v580, 0
      %v808 = vperm.slane %v581, 0
      %v809 = vperm.slane %v443, 0
      %v810 = vperm.slane %v582, 0
      %v811 = vperm.slane %v583, 0
      %v812 = vperm.slane %v584, 0
      %v813 = vperm.slane %v585, 0
      %v814 = vperm.slane %v586, 0
      %v815 = vperm.slane %v587, 0
      %v816 = vperm.slane %v588, 0
      %v817 = vperm.slane %v446, 0
      %v818 = vperm.slane %v589, 0
      %v819 = vperm.slane %v590, 0
      %v820 = vperm.slane %v591, 0
      %v821 = vperm.slane %v592, 0
      %v822 = vperm.slane %v593, 0
      %v823 = vperm.slane %v594, 0
      %v824 = vperm.slane %v595, 0
      %v825 = vperm.slane %v449, 0
      %v826 = vperm.slane %v596, 0
      %v827 = vperm.slane %v597, 0
      %v828 = vperm.slane %v598, 0
      %v829 = vperm.slane %v599, 0
      %v830 = vperm.slane %v600, 0
      %v831 = vperm.slane %v601, 0
      %v832 = vperm.slane %v602, 0
      %v833 = vperm.slane %v452, 0
      %v834 = vperm.slane %v603, 0
      %v835 = vperm.slane %v604, 0
      %v836 = vperm.slane %v605, 0
      %v837 = vperm.slane %v606, 0
      %v838 = vperm.slane %v607, 0
      %v839 = vperm.slane %v608, 0
      %v840 = vperm.slane %v609, 0
      %v841 = vperm.slane %v455, 0
      %v842 = vperm.slane %v610, 0
      %v843 = vperm.slane %v611, 0
      %v844 = vperm.slane %v612, 0
      %v845 = vperm.slane %v613, 0
      %v846 = vperm.slane %v614, 0
      %v847 = vperm.slane %v615, 0
      %v848 = vperm.slane %v616, 0
      %v849 = vperm.slane %v458, 0
      %v850 = vperm.slane %v617, 0
      %v851 = vperm.slane %v618, 0
      %v852 = vperm.slane %v619, 0
      %v853 = vperm.slane %v620, 0
      %v854 = vperm.slane %v621, 0
      %v855 = vperm.slane %v622, 0
      %v856 = vperm.slane %v623, 0
      %v857 = vperm.slane %v461, 0
      %v858 = vperm.slane %v624, 0
      %v859 = vperm.slane %v625, 0
      %v860 = vperm.slane %v626, 0
      %v861 = vperm.slane %v627, 0
      %v862 = vperm.slane %v628, 0
      %v863 = vperm.slane %v629, 0
      %v864 = vperm.slane %v630, 0
      %v865 = vperm.slane %v464, 0
      %v866 = vperm.slane %v631, 0
      %v867 = vperm.slane %v632, 0
      %v868 = vperm.slane %v633, 0
      %v869 = vperm.slane %v634, 0
      %v870 = vperm.slane %v635, 0
      %v871 = vperm.slane %v636, 0
      %v872 = vperm.slane %v637, 0
      %v873 = vperm.slane %v467, 0
      %v874 = vperm.slane %v638, 0
      %v875 = vperm.slane %v639, 0
      %v876 = vperm.slane %v640, 0
      %v877 = vperm.slane %v641, 0
      %v878 = vperm.slane %v642, 0
      %v879 = vperm.slane %v643, 0
      %v880 = vperm.slane %v644, 0
      %v881 = vperm.slane %v470, 0
      %v882 = vperm.slane %v645, 0
      %v883 = vperm.slane %v646, 0
      %v884 = vperm.slane %v647, 0
      %v885 = vperm.slane %v648, 0
      %v886 = vperm.slane %v649, 0
      %v887 = vperm.slane %v650, 0
      %v888 = vperm.slane %v651, 0
      %v889 = vperm.slane %v473, 0
      %v890 = vperm.slane %v652, 0
      %v891 = vperm.slane %v653, 0
      %v892 = vperm.slane %v654, 0
      %v893 = vperm.slane %v655, 0
      %v894 = vperm.slane %v656, 0
      %v895 = vperm.slane %v657, 0
      %v896 = vperm.slane %v658, 0
      %v897 = vperm.slane %v476, 0
      %v898 = vperm.slane %v659, 0
      %v899 = vperm.slane %v660, 0
      %v900 = vperm.slane %v661, 0
      %v901 = vperm.slane %v662, 0
      %v902 = vperm.slane %v663, 0
      %v903 = vperm.slane %v664, 0
      %v904 = vperm.slane %v665, 0
      %v905 = vperm.slane %v479, 0
      %v906 = vperm.slane %v666, 0
      %v907 = vperm.slane %v667, 0
      %v908 = vperm.slane %v668, 0
      %v909 = vperm.slane %v669, 0
      %v910 = vperm.slane %v670, 0
      %v911 = vperm.slane %v671, 0
      %v912 = vperm.slane %v672, 0
      %v913 = vperm.slane %v482, 0
      %v914 = vperm.slane %v673, 0
      %v915 = vperm.slane %v674, 0
      %v916 = vperm.slane %v675, 0
      %v917 = vperm.slane %v676, 0
      %v918 = vperm.slane %v677, 0
      %v919 = vperm.slane %v678, 0
      %v920 = vperm.slane %v679, 0
      %v921 = vperm.slane %v485, 0
      %v922 = vperm.slane %v680, 0
      %v923 = vperm.slane %v681, 0
      %v924 = vperm.slane %v682, 0
      %v925 = vperm.slane %v683, 0
      %v926 = vperm.slane %v684, 0
      %v927 = vperm.slane %v685, 0
      %v928 = vperm.slane %v686, 0
      %v929 = vperm.slane %v488, 0
      %v930 = vperm.slane %v687, 0
      %v931 = vperm.slane %v688, 0
      %v932 = vperm.slane %v689, 0
      %v933 = vperm.slane %v690, 0
      %v934 = vperm.slane %v691, 0
      %v935 = vperm.slane %v692, 0
      %v936 = vperm.slane %v693, 0
      %v937 = vperm.slane %v491, 0
      %v938 = vperm.slane %v694, 0
      %v939 = vperm.slane %v695, 0
      %v940 = vperm.slane %v696, 0
      %v941 = vperm.slane %v697, 0
      %v942 = vperm.slane %v698, 0
      %v943 = vperm.slane %v699, 0
      %v944 = vperm.slane %v700, 0
      %v945 = vperm.slane %v494, 0
      %v946 = vperm.slane %v701, 0
      %v947 = vperm.slane %v702, 0
      %v948 = vperm.slane %v703, 0
      %v949 = vperm.slane %v704, 0
      %v950 = vperm.slane %v705, 0
      %v951 = vperm.slane %v706, 0
      %v952 = vperm.slane %v707, 0
      %v953 = vperm.slane %v497, 0
      %v954 = vperm.slane %v708, 0
      %v955 = vperm.slane %v709, 0
      %v956 = vperm.slane %v710, 0
      %v957 = vperm.slane %v711, 0
      %v958 = vperm.slane %v712, 0
      %v959 = vperm.slane %v713, 0
      %v960 = vperm.slane %v714, 0
      %v961 = vperm.slane %v500, 0
      %v962 = vperm.slane %v715, 0
      %v963 = vperm.slane %v716, 0
      %v964 = vperm.slane %v717, 0
      %v965 = vperm.slane %v718, 0
      %v966 = vperm.slane %v719, 0
      %v967 = vperm.slane %v720, 0
      %v968 = vperm.slane %v721, 0
      %v969 = vperm.slane %v503, 0
      %v970 = vperm.slane %v722, 0
      %v971 = vperm.slane %v723, 0
      %v972 = vperm.slane %v724, 0
      %v973 = vperm.slane %v725, 0
      %v974 = vperm.slane %v726, 0
      %v975 = vperm.slane %v727, 0
      %v976 = vperm.slane %v728, 0
      %v977 = vperm.slane %v506, 0
      %v978 = vperm.slane %v729, 0
      %v979 = vperm.slane %v730, 0
      %v980 = vperm.slane %v731, 0
      %v981 = vperm.slane %v732, 0
      %v982 = vperm.slane %v733, 0
      %v983 = vperm.slane %v734, 0
      %v984 = vperm.slane %v735, 0
      %v985 = vperm.slane %v509, 0
      %v986 = vperm.slane %v736, 0
      %v987 = vperm.slane %v737, 0
      %v988 = vperm.slane %v738, 0
      %v989 = vperm.slane %v739, 0
      %v990 = vperm.slane %v740, 0
      %v991 = vperm.slane %v741, 0
      %v992 = vperm.slane %v742, 0
      %v993 = vperm.slane %v512, 0
      %v994 = vperm.slane %v743, 0
      %v995 = vperm.slane %v744, 0
      %v996 = vperm.slane %v745, 0
      %v997 = vperm.slane %v746, 0
      %v998 = vperm.slane %v747, 0
      %v999 = vperm.slane %v748, 0
      %v1000 = vperm.slane %v749, 0
      %v1001 = vperm.slane %v515, 0
      %v1002 = vperm.slane %v750, 0
      %v1003 = vperm.slane %v751, 0
      %v1004 = vperm.slane %v752, 0
      %v1005 = vperm.slane %v753, 0
      %v1006 = vperm.slane %v754, 0
      %v1007 = vperm.slane %v755, 0
      %v1008 = vperm.slane %v756, 0
      %v1009 = vperm.slane %v518, 0
      %v1010 = vperm.slane %v757, 0
      %v1011 = vperm.slane %v758, 0
      %v1012 = vperm.slane %v759, 0
      %v1013 = vperm.slane %v760, 0
      %v1014 = vperm.slane %v761, 0
      %v1015 = vperm.slane %v762, 0
      %v1016 = vperm.slane %v763, 0
      %v1017 = vperm.slane %v521, 0
      %v1018 = vperm.slane %v764, 0
      %v1019 = vperm.slane %v765, 0
      %v1020 = vperm.slane %v766, 0
      %v1021 = vperm.slane %v767, 0
      %v1022 = vperm.slane %v768, 0
      %v1023 = vperm.slane %v769, 0
      %v1024 = vperm.slane %v770, 0
      %v1025 = vperm.slane %v524, 0
      %v1026 = vperm.slane %v771, 0
      %v1027 = vperm.slane %v772, 0
      %v1028 = vperm.slane %v773, 0
      %v1029 = vperm.slane %v774, 0
      %v1030 = vperm.slane %v775, 0
      %v1031 = vperm.slane %v776, 0
      %v1032 = vperm.slane %v777, 0
      %v1033 = vperm.slane %v527, 0
      %v1034 = vperm.slane %v778, 0
      %v1035 = vperm.slane %v779, 0
      %v1036 = vperm.slane %v780, 0
      %v1037 = vperm.slane %v781, 0
      %v1038 = vperm.slane %v782, 0
      %v1039 = vperm.slane %v783, 0
      %v1040 = vperm.slane %v784, 0
      %v1041 = vld [vmem:[%s265] sm:$0xff]
      %v1042 = vld [vmem:[%s265 + $0x8] sm:$0xff]
      %v1043 = vld [vmem:[%s265 + $0x10] sm:$0xff]
      %v1044 = vld [vmem:[%s265 + $0x18] sm:$0xff]
      %v1045 = vld [vmem:[%s265 + $0x20] sm:$0xff]
      %v1046 = vld [vmem:[%s265 + $0x28] sm:$0xff]
      %v1047 = vld [vmem:[%s265 + $0x30] sm:$0xff]
      %v1048 = vld [vmem:[%s265 + $0x38] sm:$0xff]
      %v1049 = vld [vmem:[%s265 + $0x40] sm:$0xff]
      %v1050 = vld [vmem:[%s265 + $0x48] sm:$0xff]
      %v1051 = vld [vmem:[%s265 + $0x50] sm:$0xff]
      %v1052 = vld [vmem:[%s265 + $0x58] sm:$0xff]
      %v1053 = vld [vmem:[%s265 + $0x60] sm:$0xff]
      %v1054 = vld [vmem:[%s265 + $0x68] sm:$0xff]
      %v1055 = vld [vmem:[%s265 + $0x70] sm:$0xff]
      %v1056 = vld [vmem:[%s265 + $0x78] sm:$0xff]
      %v1057 = vld [vmem:[%s265 + $0x80] sm:$0xff]
      %v1058 = vld [vmem:[%s265 + $0x88] sm:$0xff]
      %v1059 = vld [vmem:[%s265 + $0x90] sm:$0xff]
      %v1060 = vld [vmem:[%s265 + $0x98] sm:$0xff]
      %v1061 = vld [vmem:[%s265 + $0xa0] sm:$0xff]
      %v1062 = vld [vmem:[%s265 + $0xa8] sm:$0xff]
      %v1063 = vld [vmem:[%s265 + $0xb0] sm:$0xff]
      %v1064 = vld [vmem:[%s265 + $0xb8] sm:$0xff]
      %v1065 = vld [vmem:[%s265 + $0xc0] sm:$0xff]
      %v1066 = vld [vmem:[%s265 + $0xc8] sm:$0xff]
      %v1067 = vld [vmem:[%s265 + $0xd0] sm:$0xff]
      %v1068 = vld [vmem:[%s265 + $0xd8] sm:$0xff]
      %v1069 = vld [vmem:[%s265 + $0xe0] sm:$0xff]
      %v1070 = vld [vmem:[%s265 + $0xe8] sm:$0xff]
      %v1071 = vld [vmem:[%s265 + $0xf0] sm:$0xff]
      %v1072 = vld [vmem:[%s265 + $0xf8] sm:$0xff]
      %v1073 = vld [vmem:[%s265 + $0x100] sm:$0xff]
      %v1074 = vld [vmem:[%s265 + $0x108] sm:$0xff]
      %v1075 = vld [vmem:[%s265 + $0x110] sm:$0xff]
      %v1076 = vld [vmem:[%s265 + $0x118] sm:$0xff]
      %v1077 = vld [vmem:[%s265 + $0x120] sm:$0xff]
      %v1078 = vld [vmem:[%s265 + $0x128] sm:$0xff]
      %v1079 = vld [vmem:[%s265 + $0x130] sm:$0xff]
      %v1080 = vld [vmem:[%s265 + $0x138] sm:$0xff]
      %v1081 = vld [vmem:[%s265 + $0x140] sm:$0xff]
      %v1082 = vld [vmem:[%s265 + $0x148] sm:$0xff]
      %v1083 = vld [vmem:[%s265 + $0x150] sm:$0xff]
      %v1084 = vld [vmem:[%s265 + $0x158] sm:$0xff]
      %v1085 = vld [vmem:[%s265 + $0x160] sm:$0xff]
      %v1086 = vld [vmem:[%s265 + $0x168] sm:$0xff]
      %v1087 = vld [vmem:[%s265 + $0x170] sm:$0xff]
      %v1088 = vld [vmem:[%s265 + $0x178] sm:$0xff]
      %v1089 = vld [vmem:[%s265 + $0x180] sm:$0xff]
      %v1090 = vld [vmem:[%s265 + $0x188] sm:$0xff]
      %v1091 = vld [vmem:[%s265 + $0x190] sm:$0xff]
      %v1092 = vld [vmem:[%s265 + $0x198] sm:$0xff]
      %v1093 = vld [vmem:[%s265 + $0x1a0] sm:$0xff]
      %v1094 = vld [vmem:[%s265 + $0x1a8] sm:$0xff]
      %v1095 = vld [vmem:[%s265 + $0x1b0] sm:$0xff]
      %v1096 = vld [vmem:[%s265 + $0x1b8] sm:$0xff]
      %v1097 = vld [vmem:[%s265 + $0x1c0] sm:$0xff]
      %v1098 = vld [vmem:[%s265 + $0x1c8] sm:$0xff]
      %v1099 = vld [vmem:[%s265 + $0x1d0] sm:$0xff]
      %v1100 = vld [vmem:[%s265 + $0x1d8] sm:$0xff]
      %v1101 = vld [vmem:[%s265 + $0x1e0] sm:$0xff]
      %v1102 = vld [vmem:[%s265 + $0x1e8] sm:$0xff]
      %v1103 = vld [vmem:[%s265 + $0x1f0] sm:$0xff]
      %v1104 = vld [vmem:[%s265 + $0x1f8] sm:$0xff]
      %v1105 = vld [vmem:[%s265 + $0x200] sm:$0xff]
      %v1106 = vld [vmem:[%s265 + $0x208] sm:$0xff]
      %v1107 = vld [vmem:[%s265 + $0x210] sm:$0xff]
      %v1108 = vld [vmem:[%s265 + $0x218] sm:$0xff]
      %v1109 = vld [vmem:[%s265 + $0x220] sm:$0xff]
      %v1110 = vld [vmem:[%s265 + $0x228] sm:$0xff]
      %v1111 = vld [vmem:[%s265 + $0x230] sm:$0xff]
      %v1112 = vld [vmem:[%s265 + $0x238] sm:$0xff]
      %v1113 = vld [vmem:[%s265 + $0x240] sm:$0xff]
      %v1114 = vld [vmem:[%s265 + $0x248] sm:$0xff]
      %v1115 = vld [vmem:[%s265 + $0x250] sm:$0xff]
      %v1116 = vld [vmem:[%s265 + $0x258] sm:$0xff]
      %v1117 = vld [vmem:[%s265 + $0x260] sm:$0xff]
      %v1118 = vld [vmem:[%s265 + $0x268] sm:$0xff]
      %v1119 = vld [vmem:[%s265 + $0x270] sm:$0xff]
      %v1120 = vld [vmem:[%s265 + $0x278] sm:$0xff]
      %v1121 = vld [vmem:[%s265 + $0x280] sm:$0xff]
      %v1122 = vld [vmem:[%s265 + $0x288] sm:$0xff]
      %v1123 = vld [vmem:[%s265 + $0x290] sm:$0xff]
      %v1124 = vld [vmem:[%s265 + $0x298] sm:$0xff]
      %v1125 = vld [vmem:[%s265 + $0x2a0] sm:$0xff]
      %v1126 = vld [vmem:[%s265 + $0x2a8] sm:$0xff]
      %v1127 = vld [vmem:[%s265 + $0x2b0] sm:$0xff]
      %v1128 = vld [vmem:[%s265 + $0x2b8] sm:$0xff]
      %v1129 = vld [vmem:[%s265 + $0x2c0] sm:$0xff]
      %v1130 = vld [vmem:[%s265 + $0x2c8] sm:$0xff]
      %v1131 = vld [vmem:[%s265 + $0x2d0] sm:$0xff]
      %v1132 = vld [vmem:[%s265 + $0x2d8] sm:$0xff]
      %v1133 = vld [vmem:[%s265 + $0x2e0] sm:$0xff]
      %v1134 = vld [vmem:[%s265 + $0x2e8] sm:$0xff]
      %v1135 = vld [vmem:[%s265 + $0x2f0] sm:$0xff]
      %v1136 = vld [vmem:[%s265 + $0x2f8] sm:$0xff]
      %v1137 = vld [vmem:[%s265 + $0x300] sm:$0xff]
      %v1138 = vld [vmem:[%s265 + $0x308] sm:$0xff]
      %v1139 = vld [vmem:[%s265 + $0x310] sm:$0xff]
      %v1140 = vld [vmem:[%s265 + $0x318] sm:$0xff]
      %v1141 = vld [vmem:[%s265 + $0x320] sm:$0xff]
      %v1142 = vld [vmem:[%s265 + $0x328] sm:$0xff]
      %v1143 = vld [vmem:[%s265 + $0x330] sm:$0xff]
      %v1144 = vld [vmem:[%s265 + $0x338] sm:$0xff]
      %v1145 = vld [vmem:[%s265 + $0x340] sm:$0xff]
      %v1146 = vld [vmem:[%s265 + $0x348] sm:$0xff]
      %v1147 = vld [vmem:[%s265 + $0x350] sm:$0xff]
      %v1148 = vld [vmem:[%s265 + $0x358] sm:$0xff]
      %v1149 = vld [vmem:[%s265 + $0x360] sm:$0xff]
      %v1150 = vld [vmem:[%s265 + $0x368] sm:$0xff]
      %v1151 = vld [vmem:[%s265 + $0x370] sm:$0xff]
      %v1152 = vld [vmem:[%s265 + $0x378] sm:$0xff]
      %v1153 = vld [vmem:[%s265 + $0x380] sm:$0xff]
      %v1154 = vld [vmem:[%s265 + $0x388] sm:$0xff]
      %v1155 = vld [vmem:[%s265 + $0x390] sm:$0xff]
      %v1156 = vld [vmem:[%s265 + $0x398] sm:$0xff]
      %v1157 = vld [vmem:[%s265 + $0x3a0] sm:$0xff]
      %v1158 = vld [vmem:[%s265 + $0x3a8] sm:$0xff]
      %v1159 = vld [vmem:[%s265 + $0x3b0] sm:$0xff]
      %v1160 = vld [vmem:[%s265 + $0x3b8] sm:$0xff]
      %v1161 = vld [vmem:[%s265 + $0x3c0] sm:$0xff]
      %v1162 = vld [vmem:[%s265 + $0x3c8] sm:$0xff]
      %v1163 = vld [vmem:[%s265 + $0x3d0] sm:$0xff]
      %v1164 = vld [vmem:[%s265 + $0x3d8] sm:$0xff]
      %v1165 = vld [vmem:[%s265 + $0x3e0] sm:$0xff]
      %v1166 = vld [vmem:[%s265 + $0x3e8] sm:$0xff]
      %v1167 = vld [vmem:[%s265 + $0x3f0] sm:$0xff]
      %v1168 = vld [vmem:[%s265 + $0x3f8] sm:$0xff]
      %1169 = vst [vmem:[#allocation1] ss:$4 sm:$0xff] %v785
      %s1170 = scalar_lea.vmem [#allocation1], 1
      %1171 = vst [vmem:[%s1170] ss:$4 sm:$0xff] %v786
      %s1172 = scalar_lea.vmem [#allocation1], 2
      %1173 = vst [vmem:[%s1172] ss:$4 sm:$0xff] %v787
      %s1174 = scalar_lea.vmem [#allocation1], 3
      %1175 = vst [vmem:[%s1174] ss:$4 sm:$0xff] %v788
      %s1176 = scalar_lea.vmem [#allocation1], 32
      %1177 = vst [vmem:[%s1176] ss:$4 sm:$0xff] %v789
      %s1178 = scalar_lea.vmem [#allocation1], 33
      %1179 = vst [vmem:[%s1178] ss:$4 sm:$0xff] %v790
      %s1180 = scalar_lea.vmem [#allocation1], 34
      %1181 = vst [vmem:[%s1180] ss:$4 sm:$0xff] %v791
      %s1182 = scalar_lea.vmem [#allocation1], 35
      %1183 = vst [vmem:[%s1182] ss:$4 sm:$0xff] %v792
      %v1184 = vld.sshfl [vmem:[#allocation1] sm:$0xff pattern:$0x73625140]
      %v1185 = vld.sshfl [vmem:[#allocation1 + $0x20] sm:$0xff pattern:$0x73625140]
      %1186 = vst [vmem:[#allocation1] ss:$4 sm:$0xff] %v793
      %1187 = vst [vmem:[%s1170] ss:$4 sm:$0xff] %v794
      %1188 = vst [vmem:[%s1172] ss:$4 sm:$0xff] %v795
      %1189 = vst [vmem:[%s1174] ss:$4 sm:$0xff] %v796
      %1190 = vst [vmem:[%s1176] ss:$4 sm:$0xff] %v797
      %1191 = vst [vmem:[%s1178] ss:$4 sm:$0xff] %v798
      %1192 = vst [vmem:[%s1180] ss:$4 sm:$0xff] %v799
      %1193 = vst [vmem:[%s1182] ss:$4 sm:$0xff] %v800
      %v1194 = vld.sshfl [vmem:[#allocation1] sm:$0xff pattern:$0x73625140]
      %v1195 = vld.sshfl [vmem:[#allocation1 + $0x20] sm:$0xff pattern:$0x73625140]
      %1196 = vst [vmem:[#allocation1] ss:$4 sm:$0xff] %v785
      %1197 = vst [vmem:[%s1170] ss:$4 sm:$0xff] %v786
      %1198 = vst [vmem:[%s1172] ss:$4 sm:$0xff] %v787
      %1199 = vst [vmem:[%s1174] ss:$4 sm:$0xff] %v788
      %1200 = vst [vmem:[%s1176] ss:$4 sm:$0xff] %v789
      %1201 = vst [vmem:[%s1178] ss:$4 sm:$0xff] %v790
      %1202 = vst [vmem:[%s1180] ss:$4 sm:$0xff] %v791
      %1203 = vst [vmem:[%s1182] ss:$4 sm:$0xff] %v792
      %v1204 = vld.sshfl [vmem:[#allocation1] sm:$0xff pattern:$0x73625140]
      %v1205 = vld.sshfl [vmem:[#allocation1 + $0x20] sm:$0xff pattern:$0x73625140]
      %1206 = vst [vmem:[#allocation1] ss:$4 sm:$0xff] %v793
      %1207 = vst [vmem:[%s1170] ss:$4 sm:$0xff] %v794
      %1208 = vst [vmem:[%s1172] ss:$4 sm:$0xff] %v795
      %1209 = vst [vmem:[%s1174] ss:$4 sm:$0xff] %v796
      %1210 = vst [vmem:[%s1176] ss:$4 sm:$0xff] %v797
      %1211 = vst [vmem:[%s1178] ss:$4 sm:$0xff] %v798
      %1212 = vst [vmem:[%s1180] ss:$4 sm:$0xff] %v799
      %1213 = vst [vmem:[%s1182] ss:$4 sm:$0xff] %v800
      %v1214 = vld.sshfl [vmem:[#allocation1] sm:$0xff pattern:$0x73625140]
      %v1215 = vld.sshfl [vmem:[#allocation1 + $0x20] sm:$0xff pattern:$0x73625140]
      %1216 = vst [vmem:[#allocation1] ss:$4 sm:$0xff] %v801
      %1217 = vst [vmem:[%s1170] ss:$4 sm:$0xff] %v802
      %1218 = vst [vmem:[%s1172] ss:$4 sm:$0xff] %v803
      %1219 = vst [vmem:[%s1174] ss:$4 sm:$0xff] %v804
      %1220 = vst [vmem:[%s1176] ss:$4 sm:$0xff] %v805
      %1221 = vst [vmem:[%s1178] ss:$4 sm:$0xff] %v806
      %1222 = vst [vmem:[%s1180] ss:$4 sm:$0xff] %v807
      %1223 = vst [vmem:[%s1182] ss:$4 sm:$0xff] %v808
      %v1224 = vld.sshfl [vmem:[#allocation1] sm:$0xff pattern:$0x73625140]
      %v1225 = vld.sshfl [vmem:[#allocation1 + $0x20] sm:$0xff pattern:$0x73625140]
      %1226 = vst [vmem:[#allocation1] ss:$4 sm:$0xff] %v809
      %1227 = vst [vmem:[%s1170] ss:$4 sm:$0xff] %v810
      %1228 = vst [vmem:[%s1172] ss:$4 sm:$0xff] %v811
      %1229 = vst [vmem:[%s1174] ss:$4 sm:$0xff] %v812
      %1230 = vst [vmem:[%s1176] ss:$4 sm:$0xff] %v813
      %1231 = vst [vmem:[%s1178] ss:$4 sm:$0xff] %v814
      %1232 = vst [vmem:[%s1180] ss:$4 sm:$0xff] %v815
      %1233 = vst [vmem:[%s1182] ss:$4 sm:$0xff] %v816
      %v1234 = vld.sshfl [vmem:[#allocation1] sm:$0xff pattern:$0x73625140]
      %v1235 = vld.sshfl [vmem:[#allocation1 + $0x20] sm:$0xff pattern:$0x73625140]
      %1236 = vst [vmem:[#allocation1] ss:$4 sm:$0xff] %v801
      %1237 = vst [vmem:[%s1170] ss:$4 sm:$0xff] %v802
      %1238 = vst [vmem:[%s1172] ss:$4 sm:$0xff] %v803
      %1239 = vst [vmem:[%s1174] ss:$4 sm:$0xff] %v804
      %1240 = vst [vmem:[%s1176] ss:$4 sm:$0xff] %v805
      %1241 = vst [vmem:[%s1178] ss:$4 sm:$0xff] %v806
      %1242 = vst [vmem:[%s1180] ss:$4 sm:$0xff] %v807
      %1243 = vst [vmem:[%s1182] ss:$4 sm:$0xff] %v808
      %v1244 = vld.sshfl [vmem:[#allocation1] sm:$0xff pattern:$0x73625140]
      %v1245 = vld.sshfl [vmem:[#allocation1 + $0x20] sm:$0xff pattern:$0x73625140]
      %1246 = vst [vmem:[#allocation1] ss:$4 sm:$0xff] %v809
      %1247 = vst [vmem:[%s1170] ss:$4 sm:$0xff] %v810
      %1248 = vst [vmem:[%s1172] ss:$4 sm:$0xff] %v811
      %1249 = vst [vmem:[%s1174] ss:$4 sm:$0xff] %v812
      %1250 = vst [vmem:[%s1176] ss:$4 sm:$0xff] %v813
      %1251 = vst [vmem:[%s1178] ss:$4 sm:$0xff] %v814
      %1252 = vst [vmem:[%s1180] ss:$4 sm:$0xff] %v815
      %1253 = vst [vmem:[%s1182] ss:$4 sm:$0xff] %v816
      %v1254 = vld.sshfl [vmem:[#allocation1] sm:$0xff pattern:$0x73625140]
      %v1255 = vld.sshfl [vmem:[#allocation1 + $0x20] sm:$0xff pattern:$0x73625140]
      %1256 = vst [vmem:[#allocation1] ss:$4 sm:$0xff] %v817
      %1257 = vst [vmem:[%s1170] ss:$4 sm:$0xff] %v818
      %1258 = vst [vmem:[%s1172] ss:$4 sm:$0xff] %v819
      %1259 = vst [vmem:[%s1174] ss:$4 sm:$0xff] %v820
      %1260 = vst [vmem:[%s1176] ss:$4 sm:$0xff] %v821
      %1261 = vst [vmem:[%s1178] ss:$4 sm:$0xff] %v822
      %1262 = vst [vmem:[%s1180] ss:$4 sm:$0xff] %v823
      %1263 = vst [vmem:[%s1182] ss:$4 sm:$0xff] %v824
      %v1264 = vld.sshfl [vmem:[#allocation1] sm:$0xff pattern:$0x73625140]
      %v1265 = vld.sshfl [vmem:[#allocation1 + $0x20] sm:$0xff pattern:$0x73625140]
      %1266 = vst [vmem:[#allocation1] ss:$4 sm:$0xff] %v825
      %1267 = vst [vmem:[%s1170] ss:$4 sm:$0xff] %v826
      %1268 = vst [vmem:[%s1172] ss:$4 sm:$0xff] %v827
      %1269 = vst [vmem:[%s1174] ss:$4 sm:$0xff] %v828
      %1270 = vst [vmem:[%s1176] ss:$4 sm:$0xff] %v829
      %1271 = vst [vmem:[%s1178] ss:$4 sm:$0xff] %v830
      %1272 = vst [vmem:[%s1180] ss:$4 sm:$0xff] %v831
      %1273 = vst [vmem:[%s1182] ss:$4 sm:$0xff] %v832
      %v1274 = vld.sshfl [vmem:[#allocation1] sm:$0xff pattern:$0x73625140]
      %v1275 = vld.sshfl [vmem:[#allocation1 + $0x20] sm:$0xff pattern:$0x73625140]
      %1276 = vst [vmem:[#allocation1] ss:$4 sm:$0xff] %v817
      %1277 = vst [vmem:[%s1170] ss:$4 sm:$0xff] %v818
      %1278 = vst [vmem:[%s1172] ss:$4 sm:$0xff] %v819
      %1279 = vst [vmem:[%s1174] ss:$4 sm:$0xff] %v820
      %1280 = vst [vmem:[%s1176] ss:$4 sm:$0xff] %v821
      %1281 = vst [vmem:[%s1178] ss:$4 sm:$0xff] %v822
      %1282 = vst [vmem:[%s1180] ss:$4 sm:$0xff] %v823
      %1283 = vst [vmem:[%s1182] ss:$4 sm:$0xff] %v824
      %v1284 = vld.sshfl [vmem:[#allocation1] sm:$0xff pattern:$0x73625140]
      %v1285 = vld.sshfl [vmem:[#allocation1 + $0x20] sm:$0xff pattern:$0x73625140]
      %1286 = vst [vmem:[#allocation1] ss:$4 sm:$0xff] %v825
      %1287 = vst [vmem:[%s1170] ss:$4 sm:$0xff] %v826
      %1288 = vst [vmem:[%s1172] ss:$4 sm:$0xff] %v827
      %1289 = vst [vmem:[%s1174] ss:$4 sm:$0xff] %v828
      %1290 = vst [vmem:[%s1176] ss:$4 sm:$0xff] %v829
      %1291 = vst [vmem:[%s1178] ss:$4 sm:$0xff] %v830
      %1292 = vst [vmem:[%s1180] ss:$4 sm:$0xff] %v831
      %1293 = vst [vmem:[%s1182] ss:$4 sm:$0xff] %v832
      %v1294 = vld.sshfl [vmem:[#allocation1] sm:$0xff pattern:$0x73625140]
      %v1295 = vld.sshfl [vmem:[#allocation1 + $0x20] sm:$0xff pattern:$0x73625140]
      %1296 = vst [vmem:[#allocation1] ss:$4 sm:$0xff] %v833
      %1297 = vst [vmem:[%s1170] ss:$4 sm:$0xff] %v834
      %1298 = vst [vmem:[%s1172] ss:$4 sm:$0xff] %v835
      %1299 = vst [vmem:[%s1174] ss:$4 sm:$0xff] %v836
      %1300 = vst [vmem:[%s1176] ss:$4 sm:$0xff] %v837
      %1301 = vst [vmem:[%s1178] ss:$4 sm:$0xff] %v838
      %1302 = vst [vmem:[%s1180] ss:$4 sm:$0xff] %v839
      %1303 = vst [vmem:[%s1182] ss:$4 sm:$0xff] %v840
      %v1304 = vld.sshfl [vmem:[#allocation1] sm:$0xff pattern:$0x73625140]
      %v1305 = vld.sshfl [vmem:[#allocation1 + $0x20] sm:$0xff pattern:$0x73625140]
      %1306 = vst [vmem:[#allocation1] ss:$4 sm:$0xff] %v841
      %1307 = vst [vmem:[%s1170] ss:$4 sm:$0xff] %v842
      %1308 = vst [vmem:[%s1172] ss:$4 sm:$0xff] %v843
      %1309 = vst [vmem:[%s1174] ss:$4 sm:$0xff] %v844
      %1310 = vst [vmem:[%s1176] ss:$4 sm:$0xff] %v845
      %1311 = vst [vmem:[%s1178] ss:$4 sm:$0xff] %v846
      %1312 = vst [vmem:[%s1180] ss:$4 sm:$0xff] %v847
      %1313 = vst [vmem:[%s1182] ss:$4 sm:$0xff] %v848
      %v1314 = vld.sshfl [vmem:[#allocation1] sm:$0xff pattern:$0x73625140]
      %v1315 = vld.sshfl [vmem:[#allocation1 + $0x20] sm:$0xff pattern:$0x73625140]
      %1316 = vst [vmem:[#allocation1] ss:$4 sm:$0xff] %v833
      %1317 = vst [vmem:[%s1170] ss:$4 sm:$0xff] %v834
      %1318 = vst [vmem:[%s1172] ss:$4 sm:$0xff] %v835
      %1319 = vst [vmem:[%s1174] ss:$4 sm:$0xff] %v836
      %1320 = vst [vmem:[%s1176] ss:$4 sm:$0xff] %v837
      %1321 = vst [vmem:[%s1178] ss:$4 sm:$0xff] %v838
      %1322 = vst [vmem:[%s1180] ss:$4 sm:$0xff] %v839
      %1323 = vst [vmem:[%s1182] ss:$4 sm:$0xff] %v840
      %v1324 = vld.sshfl [vmem:[#allocation1] sm:$0xff pattern:$0x73625140]
      %v1325 = vld.sshfl [vmem:[#allocation1 + $0x20] sm:$0xff pattern:$0x73625140]
      %1326 = vst [vmem:[#allocation1] ss:$4 sm:$0xff] %v841
      %1327 = vst [vmem:[%s1170] ss:$4 sm:$0xff] %v842
      %1328 = vst [vmem:[%s1172] ss:$4 sm:$0xff] %v843
      %1329 = vst [vmem:[%s1174] ss:$4 sm:$0xff] %v844
      %1330 = vst [vmem:[%s1176] ss:$4 sm:$0xff] %v845
      %1331 = vst [vmem:[%s1178] ss:$4 sm:$0xff] %v846
      %1332 = vst [vmem:[%s1180] ss:$4 sm:$0xff] %v847
      %1333 = vst [vmem:[%s1182] ss:$4 sm:$0xff] %v848
      %v1334 = vld.sshfl [vmem:[#allocation1] sm:$0xff pattern:$0x73625140]
      %v1335 = vld.sshfl [vmem:[#allocation1 + $0x20] sm:$0xff pattern:$0x73625140]
      %1336 = vst [vmem:[#allocation1] ss:$4 sm:$0xff] %v849
      %1337 = vst [vmem:[%s1170] ss:$4 sm:$0xff] %v850
      %1338 = vst [vmem:[%s1172] ss:$4 sm:$0xff] %v851
      %1339 = vst [vmem:[%s1174] ss:$4 sm:$0xff] %v852
      %1340 = vst [vmem:[%s1176] ss:$4 sm:$0xff] %v853
      %1341 = vst [vmem:[%s1178] ss:$4 sm:$0xff] %v854
      %1342 = vst [vmem:[%s1180] ss:$4 sm:$0xff] %v855
      %1343 = vst [vmem:[%s1182] ss:$4 sm:$0xff] %v856
      %v1344 = vld.sshfl [vmem:[#allocation1] sm:$0xff pattern:$0x73625140]
      %v1345 = vld.sshfl [vmem:[#allocation1 + $0x20] sm:$0xff pattern:$0x73625140]
      %1346 = vst [vmem:[#allocation1] ss:$4 sm:$0xff] %v857
      %1347 = vst [vmem:[%s1170] ss:$4 sm:$0xff] %v858
      %1348 = vst [vmem:[%s1172] ss:$4 sm:$0xff] %v859
      %1349 = vst [vmem:[%s1174] ss:$4 sm:$0xff] %v860
      %1350 = vst [vmem:[%s1176] ss:$4 sm:$0xff] %v861
      %1351 = vst [vmem:[%s1178] ss:$4 sm:$0xff] %v862
      %1352 = vst [vmem:[%s1180] ss:$4 sm:$0xff] %v863
      %1353 = vst [vmem:[%s1182] ss:$4 sm:$0xff] %v864
      %v1354 = vld.sshfl [vmem:[#allocation1] sm:$0xff pattern:$0x73625140]
      %v1355 = vld.sshfl [vmem:[#allocation1 + $0x20] sm:$0xff pattern:$0x73625140]
      %1356 = vst [vmem:[#allocation1] ss:$4 sm:$0xff] %v849
      %1357 = vst [vmem:[%s1170] ss:$4 sm:$0xff] %v850
      %1358 = vst [vmem:[%s1172] ss:$4 sm:$0xff] %v851
      %1359 = vst [vmem:[%s1174] ss:$4 sm:$0xff] %v852
      %1360 = vst [vmem:[%s1176] ss:$4 sm:$0xff] %v853
      %1361 = vst [vmem:[%s1178] ss:$4 sm:$0xff] %v854
      %1362 = vst [vmem:[%s1180] ss:$4 sm:$0xff] %v855
      %1363 = vst [vmem:[%s1182] ss:$4 sm:$0xff] %v856
      %v1364 = vld.sshfl [vmem:[#allocation1] sm:$0xff pattern:$0x73625140]
      %v1365 = vld.sshfl [vmem:[#allocation1 + $0x20] sm:$0xff pattern:$0x73625140]
      %1366 = vst [vmem:[#allocation1] ss:$4 sm:$0xff] %v857
      %1367 = vst [vmem:[%s1170] ss:$4 sm:$0xff] %v858
      %1368 = vst [vmem:[%s1172] ss:$4 sm:$0xff] %v859
      %1369 = vst [vmem:[%s1174] ss:$4 sm:$0xff] %v860
      %1370 = vst [vmem:[%s1176] ss:$4 sm:$0xff] %v861
      %1371 = vst [vmem:[%s1178] ss:$4 sm:$0xff] %v862
      %1372 = vst [vmem:[%s1180] ss:$4 sm:$0xff] %v863
      %1373 = vst [vmem:[%s1182] ss:$4 sm:$0xff] %v864
      %v1374 = vld.sshfl [vmem:[#allocation1] sm:$0xff pattern:$0x73625140]
      %v1375 = vld.sshfl [vmem:[#allocation1 + $0x20] sm:$0xff pattern:$0x73625140]
      %1376 = vst [vmem:[#allocation1] ss:$4 sm:$0xff] %v865
      %1377 = vst [vmem:[%s1170] ss:$4 sm:$0xff] %v866
      %1378 = vst [vmem:[%s1172] ss:$4 sm:$0xff] %v867
      %1379 = vst [vmem:[%s1174] ss:$4 sm:$0xff] %v868
      %1380 = vst [vmem:[%s1176] ss:$4 sm:$0xff] %v869
      %1381 = vst [vmem:[%s1178] ss:$4 sm:$0xff] %v870
      %1382 = vst [vmem:[%s1180] ss:$4 sm:$0xff] %v871
      %1383 = vst [vmem:[%s1182] ss:$4 sm:$0xff] %v872
      %v1384 = vld.sshfl [vmem:[#allocation1] sm:$0xff pattern:$0x73625140]
      %v1385 = vld.sshfl [vmem:[#allocation1 + $0x20] sm:$0xff pattern:$0x73625140]
      %1386 = vst [vmem:[#allocation1] ss:$4 sm:$0xff] %v873
      %1387 = vst [vmem:[%s1170] ss:$4 sm:$0xff] %v874
      %1388 = vst [vmem:[%s1172] ss:$4 sm:$0xff] %v875
      %1389 = vst [vmem:[%s1174] ss:$4 sm:$0xff] %v876
      %1390 = vst [vmem:[%s1176] ss:$4 sm:$0xff] %v877
      %1391 = vst [vmem:[%s1178] ss:$4 sm:$0xff] %v878
      %1392 = vst [vmem:[%s1180] ss:$4 sm:$0xff] %v879
      %1393 = vst [vmem:[%s1182] ss:$4 sm:$0xff] %v880
      %v1394 = vld.sshfl [vmem:[#allocation1] sm:$0xff pattern:$0x73625140]
      %v1395 = vld.sshfl [vmem:[#allocation1 + $0x20] sm:$0xff pattern:$0x73625140]
      %1396 = vst [vmem:[#allocation1] ss:$4 sm:$0xff] %v865
      %1397 = vst [vmem:[%s1170] ss:$4 sm:$0xff] %v866
      %1398 = vst [vmem:[%s1172] ss:$4 sm:$0xff] %v867
      %1399 = vst [vmem:[%s1174] ss:$4 sm:$0xff] %v868
      %1400 = vst [vmem:[%s1176] ss:$4 sm:$0xff] %v869
      %1401 = vst [vmem:[%s1178] ss:$4 sm:$0xff] %v870
      %1402 = vst [vmem:[%s1180] ss:$4 sm:$0xff] %v871
      %1403 = vst [vmem:[%s1182] ss:$4 sm:$0xff] %v872
      %v1404 = vld.sshfl [vmem:[#allocation1] sm:$0xff pattern:$0x73625140]
      %v1405 = vld.sshfl [vmem:[#allocation1 + $0x20] sm:$0xff pattern:$0x73625140]
      %1406 = vst [vmem:[#allocation1] ss:$4 sm:$0xff] %v873
      %1407 = vst [vmem:[%s1170] ss:$4 sm:$0xff] %v874
      %1408 = vst [vmem:[%s1172] ss:$4 sm:$0xff] %v875
      %1409 = vst [vmem:[%s1174] ss:$4 sm:$0xff] %v876
      %1410 = vst [vmem:[%s1176] ss:$4 sm:$0xff] %v877
      %1411 = vst [vmem:[%s1178] ss:$4 sm:$0xff] %v878
      %1412 = vst [vmem:[%s1180] ss:$4 sm:$0xff] %v879
      %1413 = vst [vmem:[%s1182] ss:$4 sm:$0xff] %v880
      %v1414 = vld.sshfl [vmem:[#allocation1] sm:$0xff pattern:$0x73625140]
      %v1415 = vld.sshfl [vmem:[#allocation1 + $0x20] sm:$0xff pattern:$0x73625140]
      %1416 = vst [vmem:[#allocation1] ss:$4 sm:$0xff] %v881
      %1417 = vst [vmem:[%s1170] ss:$4 sm:$0xff] %v882
      %1418 = vst [vmem:[%s1172] ss:$4 sm:$0xff] %v883
      %1419 = vst [vmem:[%s1174] ss:$4 sm:$0xff] %v884
      %1420 = vst [vmem:[%s1176] ss:$4 sm:$0xff] %v885
      %1421 = vst [vmem:[%s1178] ss:$4 sm:$0xff] %v886
      %1422 = vst [vmem:[%s1180] ss:$4 sm:$0xff] %v887
      %1423 = vst [vmem:[%s1182] ss:$4 sm:$0xff] %v888
      %v1424 = vld.sshfl [vmem:[#allocation1] sm:$0xff pattern:$0x73625140]
      %v1425 = vld.sshfl [vmem:[#allocation1 + $0x20] sm:$0xff pattern:$0x73625140]
      %1426 = vst [vmem:[#allocation1] ss:$4 sm:$0xff] %v889
      %1427 = vst [vmem:[%s1170] ss:$4 sm:$0xff] %v890
      %1428 = vst [vmem:[%s1172] ss:$4 sm:$0xff] %v891
      %1429 = vst [vmem:[%s1174] ss:$4 sm:$0xff] %v892
      %1430 = vst [vmem:[%s1176] ss:$4 sm:$0xff] %v893
      %1431 = vst [vmem:[%s1178] ss:$4 sm:$0xff] %v894
      %1432 = vst [vmem:[%s1180] ss:$4 sm:$0xff] %v895
      %1433 = vst [vmem:[%s1182] ss:$4 sm:$0xff] %v896
      %v1434 = vld.sshfl [vmem:[#allocation1] sm:$0xff pattern:$0x73625140]
      %v1435 = vld.sshfl [vmem:[#allocation1 + $0x20] sm:$0xff pattern:$0x73625140]
      %1436 = vst [vmem:[#allocation1] ss:$4 sm:$0xff] %v881
      %1437 = vst [vmem:[%s1170] ss:$4 sm:$0xff] %v882
      %1438 = vst [vmem:[%s1172] ss:$4 sm:$0xff] %v883
      %1439 = vst [vmem:[%s1174] ss:$4 sm:$0xff] %v884
      %1440 = vst [vmem:[%s1176] ss:$4 sm:$0xff] %v885
      %1441 = vst [vmem:[%s1178] ss:$4 sm:$0xff] %v886
      %1442 = vst [vmem:[%s1180] ss:$4 sm:$0xff] %v887
      %1443 = vst [vmem:[%s1182] ss:$4 sm:$0xff] %v888
      %v1444 = vld.sshfl [vmem:[#allocation1] sm:$0xff pattern:$0x73625140]
      %v1445 = vld.sshfl [vmem:[#allocation1 + $0x20] sm:$0xff pattern:$0x73625140]
      %1446 = vst [vmem:[#allocation1] ss:$4 sm:$0xff] %v889
      %1447 = vst [vmem:[%s1170] ss:$4 sm:$0xff] %v890
      %1448 = vst [vmem:[%s1172] ss:$4 sm:$0xff] %v891
      %1449 = vst [vmem:[%s1174] ss:$4 sm:$0xff] %v892
      %1450 = vst [vmem:[%s1176] ss:$4 sm:$0xff] %v893
      %1451 = vst [vmem:[%s1178] ss:$4 sm:$0xff] %v894
      %1452 = vst [vmem:[%s1180] ss:$4 sm:$0xff] %v895
      %1453 = vst [vmem:[%s1182] ss:$4 sm:$0xff] %v896
      %v1454 = vld.sshfl [vmem:[#allocation1] sm:$0xff pattern:$0x73625140]
      %v1455 = vld.sshfl [vmem:[#allocation1 + $0x20] sm:$0xff pattern:$0x73625140]
      %1456 = vst [vmem:[#allocation1] ss:$4 sm:$0xff] %v897
      %1457 = vst [vmem:[%s1170] ss:$4 sm:$0xff] %v898
      %1458 = vst [vmem:[%s1172] ss:$4 sm:$0xff] %v899
      %1459 = vst [vmem:[%s1174] ss:$4 sm:$0xff] %v900
      %1460 = vst [vmem:[%s1176] ss:$4 sm:$0xff] %v901
      %1461 = vst [vmem:[%s1178] ss:$4 sm:$0xff] %v902
      %1462 = vst [vmem:[%s1180] ss:$4 sm:$0xff] %v903
      %1463 = vst [vmem:[%s1182] ss:$4 sm:$0xff] %v904
      %v1464 = vld.sshfl [vmem:[#allocation1] sm:$0xff pattern:$0x73625140]
      %v1465 = vld.sshfl [vmem:[#allocation1 + $0x20] sm:$0xff pattern:$0x73625140]
      %1466 = vst [vmem:[#allocation1] ss:$4 sm:$0xff] %v905
      %1467 = vst [vmem:[%s1170] ss:$4 sm:$0xff] %v906
      %1468 = vst [vmem:[%s1172] ss:$4 sm:$0xff] %v907
      %1469 = vst [vmem:[%s1174] ss:$4 sm:$0xff] %v908
      %1470 = vst [vmem:[%s1176] ss:$4 sm:$0xff] %v909
      %1471 = vst [vmem:[%s1178] ss:$4 sm:$0xff] %v910
      %1472 = vst [vmem:[%s1180] ss:$4 sm:$0xff] %v911
      %1473 = vst [vmem:[%s1182] ss:$4 sm:$0xff] %v912
      %v1474 = vld.sshfl [vmem:[#allocation1] sm:$0xff pattern:$0x73625140]
      %v1475 = vld.sshfl [vmem:[#allocation1 + $0x20] sm:$0xff pattern:$0x73625140]
      %1476 = vst [vmem:[#allocation1] ss:$4 sm:$0xff] %v897
      %1477 = vst [vmem:[%s1170] ss:$4 sm:$0xff] %v898
      %1478 = vst [vmem:[%s1172] ss:$4 sm:$0xff] %v899
      %1479 = vst [vmem:[%s1174] ss:$4 sm:$0xff] %v900
      %1480 = vst [vmem:[%s1176] ss:$4 sm:$0xff] %v901
      %1481 = vst [vmem:[%s1178] ss:$4 sm:$0xff] %v902
      %1482 = vst [vmem:[%s1180] ss:$4 sm:$0xff] %v903
      %1483 = vst [vmem:[%s1182] ss:$4 sm:$0xff] %v904
      %v1484 = vld.sshfl [vmem:[#allocation1] sm:$0xff pattern:$0x73625140]
      %v1485 = vld.sshfl [vmem:[#allocation1 + $0x20] sm:$0xff pattern:$0x73625140]
      %1486 = vst [vmem:[#allocation1] ss:$4 sm:$0xff] %v905
      %1487 = vst [vmem:[%s1170] ss:$4 sm:$0xff] %v906
      %1488 = vst [vmem:[%s1172] ss:$4 sm:$0xff] %v907
      %1489 = vst [vmem:[%s1174] ss:$4 sm:$0xff] %v908
      %1490 = vst [vmem:[%s1176] ss:$4 sm:$0xff] %v909
      %1491 = vst [vmem:[%s1178] ss:$4 sm:$0xff] %v910
      %1492 = vst [vmem:[%s1180] ss:$4 sm:$0xff] %v911
      %1493 = vst [vmem:[%s1182] ss:$4 sm:$0xff] %v912
      %v1494 = vld.sshfl [vmem:[#allocation1] sm:$0xff pattern:$0x73625140]
      %v1495 = vld.sshfl [vmem:[#allocation1 + $0x20] sm:$0xff pattern:$0x73625140]
      %1496 = vst [vmem:[#allocation1] ss:$4 sm:$0xff] %v913
      %1497 = vst [vmem:[%s1170] ss:$4 sm:$0xff] %v914
      %1498 = vst [vmem:[%s1172] ss:$4 sm:$0xff] %v915
      %1499 = vst [vmem:[%s1174] ss:$4 sm:$0xff] %v916
      %1500 = vst [vmem:[%s1176] ss:$4 sm:$0xff] %v917
      %1501 = vst [vmem:[%s1178] ss:$4 sm:$0xff] %v918
      %1502 = vst [vmem:[%s1180] ss:$4 sm:$0xff] %v919
      %1503 = vst [vmem:[%s1182] ss:$4 sm:$0xff] %v920
      %v1504 = vld.sshfl [vmem:[#allocation1] sm:$0xff pattern:$0x73625140]
      %v1505 = vld.sshfl [vmem:[#allocation1 + $0x20] sm:$0xff pattern:$0x73625140]
      %1506 = vst [vmem:[#allocation1] ss:$4 sm:$0xff] %v921
      %1507 = vst [vmem:[%s1170] ss:$4 sm:$0xff] %v922
      %1508 = vst [vmem:[%s1172] ss:$4 sm:$0xff] %v923
      %1509 = vst [vmem:[%s1174] ss:$4 sm:$0xff] %v924
      %1510 = vst [vmem:[%s1176] ss:$4 sm:$0xff] %v925
      %1511 = vst [vmem:[%s1178] ss:$4 sm:$0xff] %v926
      %1512 = vst [vmem:[%s1180] ss:$4 sm:$0xff] %v927
      %1513 = vst [vmem:[%s1182] ss:$4 sm:$0xff] %v928
      %v1514 = vld.sshfl [vmem:[#allocation1] sm:$0xff pattern:$0x73625140]
      %v1515 = vld.sshfl [vmem:[#allocation1 + $0x20] sm:$0xff pattern:$0x73625140]
      %1516 = vst [vmem:[#allocation1] ss:$4 sm:$0xff] %v913
      %1517 = vst [vmem:[%s1170] ss:$4 sm:$0xff] %v914
      %1518 = vst [vmem:[%s1172] ss:$4 sm:$0xff] %v915
      %1519 = vst [vmem:[%s1174] ss:$4 sm:$0xff] %v916
      %1520 = vst [vmem:[%s1176] ss:$4 sm:$0xff] %v917
      %1521 = vst [vmem:[%s1178] ss:$4 sm:$0xff] %v918
      %1522 = vst [vmem:[%s1180] ss:$4 sm:$0xff] %v919
      %1523 = vst [vmem:[%s1182] ss:$4 sm:$0xff] %v920
      %v1524 = vld.sshfl [vmem:[#allocation1] sm:$0xff pattern:$0x73625140]
      %v1525 = vld.sshfl [vmem:[#allocation1 + $0x20] sm:$0xff pattern:$0x73625140]
      %1526 = vst [vmem:[#allocation1] ss:$4 sm:$0xff] %v921
      %1527 = vst [vmem:[%s1170] ss:$4 sm:$0xff] %v922
      %1528 = vst [vmem:[%s1172] ss:$4 sm:$0xff] %v923
      %1529 = vst [vmem:[%s1174] ss:$4 sm:$0xff] %v924
      %1530 = vst [vmem:[%s1176] ss:$4 sm:$0xff] %v925
      %1531 = vst [vmem:[%s1178] ss:$4 sm:$0xff] %v926
      %1532 = vst [vmem:[%s1180] ss:$4 sm:$0xff] %v927
      %1533 = vst [vmem:[%s1182] ss:$4 sm:$0xff] %v928
      %v1534 = vld.sshfl [vmem:[#allocation1] sm:$0xff pattern:$0x73625140]
      %v1535 = vld.sshfl [vmem:[#allocation1 + $0x20] sm:$0xff pattern:$0x73625140]
      %1536 = vst [vmem:[#allocation1] ss:$4 sm:$0xff] %v929
      %1537 = vst [vmem:[%s1170] ss:$4 sm:$0xff] %v930
      %1538 = vst [vmem:[%s1172] ss:$4 sm:$0xff] %v931
      %1539 = vst [vmem:[%s1174] ss:$4 sm:$0xff] %v932
      %1540 = vst [vmem:[%s1176] ss:$4 sm:$0xff] %v933
      %1541 = vst [vmem:[%s1178] ss:$4 sm:$0xff] %v934
      %1542 = vst [vmem:[%s1180] ss:$4 sm:$0xff] %v935
      %1543 = vst [vmem:[%s1182] ss:$4 sm:$0xff] %v936
      %v1544 = vld.sshfl [vmem:[#allocation1] sm:$0xff pattern:$0x73625140]
      %v1545 = vld.sshfl [vmem:[#allocation1 + $0x20] sm:$0xff pattern:$0x73625140]
      %1546 = vst [vmem:[#allocation1] ss:$4 sm:$0xff] %v937
      %1547 = vst [vmem:[%s1170] ss:$4 sm:$0xff] %v938
      %1548 = vst [vmem:[%s1172] ss:$4 sm:$0xff] %v939
      %1549 = vst [vmem:[%s1174] ss:$4 sm:$0xff] %v940
      %1550 = vst [vmem:[%s1176] ss:$4 sm:$0xff] %v941
      %1551 = vst [vmem:[%s1178] ss:$4 sm:$0xff] %v942
      %1552 = vst [vmem:[%s1180] ss:$4 sm:$0xff] %v943
      %1553 = vst [vmem:[%s1182] ss:$4 sm:$0xff] %v944
      %v1554 = vld.sshfl [vmem:[#allocation1] sm:$0xff pattern:$0x73625140]
      %v1555 = vld.sshfl [vmem:[#allocation1 + $0x20] sm:$0xff pattern:$0x73625140]
      %1556 = vst [vmem:[#allocation1] ss:$4 sm:$0xff] %v929
      %1557 = vst [vmem:[%s1170] ss:$4 sm:$0xff] %v930
      %1558 = vst [vmem:[%s1172] ss:$4 sm:$0xff] %v931
      %1559 = vst [vmem:[%s1174] ss:$4 sm:$0xff] %v932
      %1560 = vst [vmem:[%s1176] ss:$4 sm:$0xff] %v933
      %1561 = vst [vmem:[%s1178] ss:$4 sm:$0xff] %v934
      %1562 = vst [vmem:[%s1180] ss:$4 sm:$0xff] %v935
      %1563 = vst [vmem:[%s1182] ss:$4 sm:$0xff] %v936
      %v1564 = vld.sshfl [vmem:[#allocation1] sm:$0xff pattern:$0x73625140]
      %v1565 = vld.sshfl [vmem:[#allocation1 + $0x20] sm:$0xff pattern:$0x73625140]
      %1566 = vst [vmem:[#allocation1] ss:$4 sm:$0xff] %v937
      %1567 = vst [vmem:[%s1170] ss:$4 sm:$0xff] %v938
      %1568 = vst [vmem:[%s1172] ss:$4 sm:$0xff] %v939
      %1569 = vst [vmem:[%s1174] ss:$4 sm:$0xff] %v940
      %1570 = vst [vmem:[%s1176] ss:$4 sm:$0xff] %v941
      %1571 = vst [vmem:[%s1178] ss:$4 sm:$0xff] %v942
      %1572 = vst [vmem:[%s1180] ss:$4 sm:$0xff] %v943
      %1573 = vst [vmem:[%s1182] ss:$4 sm:$0xff] %v944
      %v1574 = vld.sshfl [vmem:[#allocation1] sm:$0xff pattern:$0x73625140]
      %v1575 = vld.sshfl [vmem:[#allocation1 + $0x20] sm:$0xff pattern:$0x73625140]
      %1576 = vst [vmem:[#allocation1] ss:$4 sm:$0xff] %v945
      %1577 = vst [vmem:[%s1170] ss:$4 sm:$0xff] %v946
      %1578 = vst [vmem:[%s1172] ss:$4 sm:$0xff] %v947
      %1579 = vst [vmem:[%s1174] ss:$4 sm:$0xff] %v948
      %1580 = vst [vmem:[%s1176] ss:$4 sm:$0xff] %v949
      %1581 = vst [vmem:[%s1178] ss:$4 sm:$0xff] %v950
      %1582 = vst [vmem:[%s1180] ss:$4 sm:$0xff] %v951
      %1583 = vst [vmem:[%s1182] ss:$4 sm:$0xff] %v952
      %v1584 = vld.sshfl [vmem:[#allocation1] sm:$0xff pattern:$0x73625140]
      %v1585 = vld.sshfl [vmem:[#allocation1 + $0x20] sm:$0xff pattern:$0x73625140]
      %1586 = vst [vmem:[#allocation1] ss:$4 sm:$0xff] %v953
      %1587 = vst [vmem:[%s1170] ss:$4 sm:$0xff] %v954
      %1588 = vst [vmem:[%s1172] ss:$4 sm:$0xff] %v955
      %1589 = vst [vmem:[%s1174] ss:$4 sm:$0xff] %v956
      %1590 = vst [vmem:[%s1176] ss:$4 sm:$0xff] %v957
      %1591 = vst [vmem:[%s1178] ss:$4 sm:$0xff] %v958
      %1592 = vst [vmem:[%s1180] ss:$4 sm:$0xff] %v959
      %1593 = vst [vmem:[%s1182] ss:$4 sm:$0xff] %v960
      %v1594 = vld.sshfl [vmem:[#allocation1] sm:$0xff pattern:$0x73625140]
      %v1595 = vld.sshfl [vmem:[#allocation1 + $0x20] sm:$0xff pattern:$0x73625140]
      %1596 = vst [vmem:[#allocation1] ss:$4 sm:$0xff] %v945
      %1597 = vst [vmem:[%s1170] ss:$4 sm:$0xff] %v946
      %1598 = vst [vmem:[%s1172] ss:$4 sm:$0xff] %v947
      %1599 = vst [vmem:[%s1174] ss:$4 sm:$0xff] %v948
      %1600 = vst [vmem:[%s1176] ss:$4 sm:$0xff] %v949
      %1601 = vst [vmem:[%s1178] ss:$4 sm:$0xff] %v950
      %1602 = vst [vmem:[%s1180] ss:$4 sm:$0xff] %v951
      %1603 = vst [vmem:[%s1182] ss:$4 sm:$0xff] %v952
      %v1604 = vld.sshfl [vmem:[#allocation1] sm:$0xff pattern:$0x73625140]
      %v1605 = vld.sshfl [vmem:[#allocation1 + $0x20] sm:$0xff pattern:$0x73625140]
      %1606 = vst [vmem:[#allocation1] ss:$4 sm:$0xff] %v953
      %1607 = vst [vmem:[%s1170] ss:$4 sm:$0xff] %v954
      %1608 = vst [vmem:[%s1172] ss:$4 sm:$0xff] %v955
      %1609 = vst [vmem:[%s1174] ss:$4 sm:$0xff] %v956
      %1610 = vst [vmem:[%s1176] ss:$4 sm:$0xff] %v957
      %1611 = vst [vmem:[%s1178] ss:$4 sm:$0xff] %v958
      %1612 = vst [vmem:[%s1180] ss:$4 sm:$0xff] %v959
      %1613 = vst [vmem:[%s1182] ss:$4 sm:$0xff] %v960
      %v1614 = vld.sshfl [vmem:[#allocation1] sm:$0xff pattern:$0x73625140]
      %v1615 = vld.sshfl [vmem:[#allocation1 + $0x20] sm:$0xff pattern:$0x73625140]
      %1616 = vst [vmem:[#allocation1] ss:$4 sm:$0xff] %v961
      %1617 = vst [vmem:[%s1170] ss:$4 sm:$0xff] %v962
      %1618 = vst [vmem:[%s1172] ss:$4 sm:$0xff] %v963
      %1619 = vst [vmem:[%s1174] ss:$4 sm:$0xff] %v964
      %1620 = vst [vmem:[%s1176] ss:$4 sm:$0xff] %v965
      %1621 = vst [vmem:[%s1178] ss:$4 sm:$0xff] %v966
      %1622 = vst [vmem:[%s1180] ss:$4 sm:$0xff] %v967
      %1623 = vst [vmem:[%s1182] ss:$4 sm:$0xff] %v968
      %v1624 = vld.sshfl [vmem:[#allocation1] sm:$0xff pattern:$0x73625140]
      %v1625 = vld.sshfl [vmem:[#allocation1 + $0x20] sm:$0xff pattern:$0x73625140]
      %1626 = vst [vmem:[#allocation1] ss:$4 sm:$0xff] %v969
      %1627 = vst [vmem:[%s1170] ss:$4 sm:$0xff] %v970
      %1628 = vst [vmem:[%s1172] ss:$4 sm:$0xff] %v971
      %1629 = vst [vmem:[%s1174] ss:$4 sm:$0xff] %v972
      %1630 = vst [vmem:[%s1176] ss:$4 sm:$0xff] %v973
      %1631 = vst [vmem:[%s1178] ss:$4 sm:$0xff] %v974
      %1632 = vst [vmem:[%s1180] ss:$4 sm:$0xff] %v975
      %1633 = vst [vmem:[%s1182] ss:$4 sm:$0xff] %v976
      %v1634 = vld.sshfl [vmem:[#allocation1] sm:$0xff pattern:$0x73625140]
      %v1635 = vld.sshfl [vmem:[#allocation1 + $0x20] sm:$0xff pattern:$0x73625140]
      %1636 = vst [vmem:[#allocation1] ss:$4 sm:$0xff] %v961
      %1637 = vst [vmem:[%s1170] ss:$4 sm:$0xff] %v962
      %1638 = vst [vmem:[%s1172] ss:$4 sm:$0xff] %v963
      %1639 = vst [vmem:[%s1174] ss:$4 sm:$0xff] %v964
      %1640 = vst [vmem:[%s1176] ss:$4 sm:$0xff] %v965
      %1641 = vst [vmem:[%s1178] ss:$4 sm:$0xff] %v966
      %1642 = vst [vmem:[%s1180] ss:$4 sm:$0xff] %v967
      %1643 = vst [vmem:[%s1182] ss:$4 sm:$0xff] %v968
      %v1644 = vld.sshfl [vmem:[#allocation1] sm:$0xff pattern:$0x73625140]
      %v1645 = vld.sshfl [vmem:[#allocation1 + $0x20] sm:$0xff pattern:$0x73625140]
      %1646 = vst [vmem:[#allocation1] ss:$4 sm:$0xff] %v969
      %1647 = vst [vmem:[%s1170] ss:$4 sm:$0xff] %v970
      %1648 = vst [vmem:[%s1172] ss:$4 sm:$0xff] %v971
      %1649 = vst [vmem:[%s1174] ss:$4 sm:$0xff] %v972
      %1650 = vst [vmem:[%s1176] ss:$4 sm:$0xff] %v973
      %1651 = vst [vmem:[%s1178] ss:$4 sm:$0xff] %v974
      %1652 = vst [vmem:[%s1180] ss:$4 sm:$0xff] %v975
      %1653 = vst [vmem:[%s1182] ss:$4 sm:$0xff] %v976
      %v1654 = vld.sshfl [vmem:[#allocation1] sm:$0xff pattern:$0x73625140]
      %v1655 = vld.sshfl [vmem:[#allocation1 + $0x20] sm:$0xff pattern:$0x73625140]
      %1656 = vst [vmem:[#allocation1] ss:$4 sm:$0xff] %v977
      %1657 = vst [vmem:[%s1170] ss:$4 sm:$0xff] %v978
      %1658 = vst [vmem:[%s1172] ss:$4 sm:$0xff] %v979
      %1659 = vst [vmem:[%s1174] ss:$4 sm:$0xff] %v980
      %1660 = vst [vmem:[%s1176] ss:$4 sm:$0xff] %v981
      %1661 = vst [vmem:[%s1178] ss:$4 sm:$0xff] %v982
      %1662 = vst [vmem:[%s1180] ss:$4 sm:$0xff] %v983
      %1663 = vst [vmem:[%s1182] ss:$4 sm:$0xff] %v984
      %v1664 = vld.sshfl [vmem:[#allocation1] sm:$0xff pattern:$0x73625140]
      %v1665 = vld.sshfl [vmem:[#allocation1 + $0x20] sm:$0xff pattern:$0x73625140]
      %1666 = vst [vmem:[#allocation1] ss:$4 sm:$0xff] %v985
      %1667 = vst [vmem:[%s1170] ss:$4 sm:$0xff] %v986
      %1668 = vst [vmem:[%s1172] ss:$4 sm:$0xff] %v987
      %1669 = vst [vmem:[%s1174] ss:$4 sm:$0xff] %v988
      %1670 = vst [vmem:[%s1176] ss:$4 sm:$0xff] %v989
      %1671 = vst [vmem:[%s1178] ss:$4 sm:$0xff] %v990
      %1672 = vst [vmem:[%s1180] ss:$4 sm:$0xff] %v991
      %1673 = vst [vmem:[%s1182] ss:$4 sm:$0xff] %v992
      %v1674 = vld.sshfl [vmem:[#allocation1] sm:$0xff pattern:$0x73625140]
      %v1675 = vld.sshfl [vmem:[#allocation1 + $0x20] sm:$0xff pattern:$0x73625140]
      %1676 = vst [vmem:[#allocation1] ss:$4 sm:$0xff] %v977
      %1677 = vst [vmem:[%s1170] ss:$4 sm:$0xff] %v978
      %1678 = vst [vmem:[%s1172] ss:$4 sm:$0xff] %v979
      %1679 = vst [vmem:[%s1174] ss:$4 sm:$0xff] %v980
      %1680 = vst [vmem:[%s1176] ss:$4 sm:$0xff] %v981
      %1681 = vst [vmem:[%s1178] ss:$4 sm:$0xff] %v982
      %1682 = vst [vmem:[%s1180] ss:$4 sm:$0xff] %v983
      %1683 = vst [vmem:[%s1182] ss:$4 sm:$0xff] %v984
      %v1684 = vld.sshfl [vmem:[#allocation1] sm:$0xff pattern:$0x73625140]
      %v1685 = vld.sshfl [vmem:[#allocation1 + $0x20] sm:$0xff pattern:$0x73625140]
      %1686 = vst [vmem:[#allocation1] ss:$4 sm:$0xff] %v985
      %1687 = vst [vmem:[%s1170] ss:$4 sm:$0xff] %v986
      %1688 = vst [vmem:[%s1172] ss:$4 sm:$0xff] %v987
      %1689 = vst [vmem:[%s1174] ss:$4 sm:$0xff] %v988
      %1690 = vst [vmem:[%s1176] ss:$4 sm:$0xff] %v989
      %1691 = vst [vmem:[%s1178] ss:$4 sm:$0xff] %v990
      %1692 = vst [vmem:[%s1180] ss:$4 sm:$0xff] %v991
      %1693 = vst [vmem:[%s1182] ss:$4 sm:$0xff] %v992
      %v1694 = vld.sshfl [vmem:[#allocation1] sm:$0xff pattern:$0x73625140]
      %v1695 = vld.sshfl [vmem:[#allocation1 + $0x20] sm:$0xff pattern:$0x73625140]
      %1696 = vst [vmem:[#allocation1] ss:$4 sm:$0xff] %v993
      %1697 = vst [vmem:[%s1170] ss:$4 sm:$0xff] %v994
      %1698 = vst [vmem:[%s1172] ss:$4 sm:$0xff] %v995
      %1699 = vst [vmem:[%s1174] ss:$4 sm:$0xff] %v996
      %1700 = vst [vmem:[%s1176] ss:$4 sm:$0xff] %v997
      %1701 = vst [vmem:[%s1178] ss:$4 sm:$0xff] %v998
      %1702 = vst [vmem:[%s1180] ss:$4 sm:$0xff] %v999
      %1703 = vst [vmem:[%s1182] ss:$4 sm:$0xff] %v1000
      %v1704 = vld.sshfl [vmem:[#allocation1] sm:$0xff pattern:$0x73625140]
      %v1705 = vld.sshfl [vmem:[#allocation1 + $0x20] sm:$0xff pattern:$0x73625140]
      %1706 = vst [vmem:[#allocation1] ss:$4 sm:$0xff] %v1001
      %1707 = vst [vmem:[%s1170] ss:$4 sm:$0xff] %v1002
      %1708 = vst [vmem:[%s1172] ss:$4 sm:$0xff] %v1003
      %1709 = vst [vmem:[%s1174] ss:$4 sm:$0xff] %v1004
      %1710 = vst [vmem:[%s1176] ss:$4 sm:$0xff] %v1005
      %1711 = vst [vmem:[%s1178] ss:$4 sm:$0xff] %v1006
      %1712 = vst [vmem:[%s1180] ss:$4 sm:$0xff] %v1007
      %1713 = vst [vmem:[%s1182] ss:$4 sm:$0xff] %v1008
      %v1714 = vld.sshfl [vmem:[#allocation1] sm:$0xff pattern:$0x73625140]
      %v1715 = vld.sshfl [vmem:[#allocation1 + $0x20] sm:$0xff pattern:$0x73625140]
      %1716 = vst [vmem:[#allocation1] ss:$4 sm:$0xff] %v993
      %1717 = vst [vmem:[%s1170] ss:$4 sm:$0xff] %v994
      %1718 = vst [vmem:[%s1172] ss:$4 sm:$0xff] %v995
      %1719 = vst [vmem:[%s1174] ss:$4 sm:$0xff] %v996
      %1720 = vst [vmem:[%s1176] ss:$4 sm:$0xff] %v997
      %1721 = vst [vmem:[%s1178] ss:$4 sm:$0xff] %v998
      %1722 = vst [vmem:[%s1180] ss:$4 sm:$0xff] %v999
      %1723 = vst [vmem:[%s1182] ss:$4 sm:$0xff] %v1000
      %v1724 = vld.sshfl [vmem:[#allocation1] sm:$0xff pattern:$0x73625140]
      %v1725 = vld.sshfl [vmem:[#allocation1 + $0x20] sm:$0xff pattern:$0x73625140]
      %1726 = vst [vmem:[#allocation1] ss:$4 sm:$0xff] %v1001
      %1727 = vst [vmem:[%s1170] ss:$4 sm:$0xff] %v1002
      %1728 = vst [vmem:[%s1172] ss:$4 sm:$0xff] %v1003
      %1729 = vst [vmem:[%s1174] ss:$4 sm:$0xff] %v1004
      %1730 = vst [vmem:[%s1176] ss:$4 sm:$0xff] %v1005
      %1731 = vst [vmem:[%s1178] ss:$4 sm:$0xff] %v1006
      %1732 = vst [vmem:[%s1180] ss:$4 sm:$0xff] %v1007
      %1733 = vst [vmem:[%s1182] ss:$4 sm:$0xff] %v1008
      %v1734 = vld.sshfl [vmem:[#allocation1] sm:$0xff pattern:$0x73625140]
      %v1735 = vld.sshfl [vmem:[#allocation1 + $0x20] sm:$0xff pattern:$0x73625140]
      %1736 = vst [vmem:[#allocation1] ss:$4 sm:$0xff] %v1009
      %1737 = vst [vmem:[%s1170] ss:$4 sm:$0xff] %v1010
      %1738 = vst [vmem:[%s1172] ss:$4 sm:$0xff] %v1011
      %1739 = vst [vmem:[%s1174] ss:$4 sm:$0xff] %v1012
      %1740 = vst [vmem:[%s1176] ss:$4 sm:$0xff] %v1013
      %1741 = vst [vmem:[%s1178] ss:$4 sm:$0xff] %v1014
      %1742 = vst [vmem:[%s1180] ss:$4 sm:$0xff] %v1015
      %1743 = vst [vmem:[%s1182] ss:$4 sm:$0xff] %v1016
      %v1744 = vld.sshfl [vmem:[#allocation1] sm:$0xff pattern:$0x73625140]
      %v1745 = vld.sshfl [vmem:[#allocation1 + $0x20] sm:$0xff pattern:$0x73625140]
      %1746 = vst [vmem:[#allocation1] ss:$4 sm:$0xff] %v1017
      %1747 = vst [vmem:[%s1170] ss:$4 sm:$0xff] %v1018
      %1748 = vst [vmem:[%s1172] ss:$4 sm:$0xff] %v1019
      %1749 = vst [vmem:[%s1174] ss:$4 sm:$0xff] %v1020
      %1750 = vst [vmem:[%s1176] ss:$4 sm:$0xff] %v1021
      %1751 = vst [vmem:[%s1178] ss:$4 sm:$0xff] %v1022
      %1752 = vst [vmem:[%s1180] ss:$4 sm:$0xff] %v1023
      %1753 = vst [vmem:[%s1182] ss:$4 sm:$0xff] %v1024
      %v1754 = vld.sshfl [vmem:[#allocation1] sm:$0xff pattern:$0x73625140]
      %v1755 = vld.sshfl [vmem:[#allocation1 + $0x20] sm:$0xff pattern:$0x73625140]
      %1756 = vst [vmem:[#allocation1] ss:$4 sm:$0xff] %v1009
      %1757 = vst [vmem:[%s1170] ss:$4 sm:$0xff] %v1010
      %1758 = vst [vmem:[%s1172] ss:$4 sm:$0xff] %v1011
      %1759 = vst [vmem:[%s1174] ss:$4 sm:$0xff] %v1012
      %1760 = vst [vmem:[%s1176] ss:$4 sm:$0xff] %v1013
      %1761 = vst [vmem:[%s1178] ss:$4 sm:$0xff] %v1014
      %1762 = vst [vmem:[%s1180] ss:$4 sm:$0xff] %v1015
      %1763 = vst [vmem:[%s1182] ss:$4 sm:$0xff] %v1016
      %v1764 = vld.sshfl [vmem:[#allocation1] sm:$0xff pattern:$0x73625140]
      %v1765 = vld.sshfl [vmem:[#allocation1 + $0x20] sm:$0xff pattern:$0x73625140]
      %1766 = vst [vmem:[#allocation1] ss:$4 sm:$0xff] %v1017
      %1767 = vst [vmem:[%s1170] ss:$4 sm:$0xff] %v1018
      %1768 = vst [vmem:[%s1172] ss:$4 sm:$0xff] %v1019
      %1769 = vst [vmem:[%s1174] ss:$4 sm:$0xff] %v1020
      %1770 = vst [vmem:[%s1176] ss:$4 sm:$0xff] %v1021
      %1771 = vst [vmem:[%s1178] ss:$4 sm:$0xff] %v1022
      %1772 = vst [vmem:[%s1180] ss:$4 sm:$0xff] %v1023
      %1773 = vst [vmem:[%s1182] ss:$4 sm:$0xff] %v1024
      %v1774 = vld.sshfl [vmem:[#allocation1] sm:$0xff pattern:$0x73625140]
      %v1775 = vld.sshfl [vmem:[#allocation1 + $0x20] sm:$0xff pattern:$0x73625140]
      %1776 = vst [vmem:[#allocation1] ss:$4 sm:$0xff] %v1025
      %1777 = vst [vmem:[%s1170] ss:$4 sm:$0xff] %v1026
      %1778 = vst [vmem:[%s1172] ss:$4 sm:$0xff] %v1027
      %1779 = vst [vmem:[%s1174] ss:$4 sm:$0xff] %v1028
      %1780 = vst [vmem:[%s1176] ss:$4 sm:$0xff] %v1029
      %1781 = vst [vmem:[%s1178] ss:$4 sm:$0xff] %v1030
      %1782 = vst [vmem:[%s1180] ss:$4 sm:$0xff] %v1031
      %1783 = vst [vmem:[%s1182] ss:$4 sm:$0xff] %v1032
      %v1784 = vld.sshfl [vmem:[#allocation1] sm:$0xff pattern:$0x73625140]
      %v1785 = vld.sshfl [vmem:[#allocation1 + $0x20] sm:$0xff pattern:$0x73625140]
      %1786 = vst [vmem:[#allocation1] ss:$4 sm:$0xff] %v1033
      %1787 = vst [vmem:[%s1170] ss:$4 sm:$0xff] %v1034
      %1788 = vst [vmem:[%s1172] ss:$4 sm:$0xff] %v1035
      %1789 = vst [vmem:[%s1174] ss:$4 sm:$0xff] %v1036
      %1790 = vst [vmem:[%s1176] ss:$4 sm:$0xff] %v1037
      %1791 = vst [vmem:[%s1178] ss:$4 sm:$0xff] %v1038
      %1792 = vst [vmem:[%s1180] ss:$4 sm:$0xff] %v1039
      %1793 = vst [vmem:[%s1182] ss:$4 sm:$0xff] %v1040
      %v1794 = vld.sshfl [vmem:[#allocation1] sm:$0xff pattern:$0x73625140]
      %v1795 = vld.sshfl [vmem:[#allocation1 + $0x20] sm:$0xff pattern:$0x73625140]
      %1796 = vst [vmem:[#allocation1] ss:$4 sm:$0xff] %v1025
      %1797 = vst [vmem:[%s1170] ss:$4 sm:$0xff] %v1026
      %1798 = vst [vmem:[%s1172] ss:$4 sm:$0xff] %v1027
      %1799 = vst [vmem:[%s1174] ss:$4 sm:$0xff] %v1028
      %1800 = vst [vmem:[%s1176] ss:$4 sm:$0xff] %v1029
      %1801 = vst [vmem:[%s1178] ss:$4 sm:$0xff] %v1030
      %1802 = vst [vmem:[%s1180] ss:$4 sm:$0xff] %v1031
      %1803 = vst [vmem:[%s1182] ss:$4 sm:$0xff] %v1032
      %v1804 = vld.sshfl [vmem:[#allocation1] sm:$0xff pattern:$0x73625140]
      %v1805 = vld.sshfl [vmem:[#allocation1 + $0x20] sm:$0xff pattern:$0x73625140]
      %1806 = vst [vmem:[#allocation1] ss:$4 sm:$0xff] %v1033
      %1807 = vst [vmem:[%s1170] ss:$4 sm:$0xff] %v1034
      %1808 = vst [vmem:[%s1172] ss:$4 sm:$0xff] %v1035
      %1809 = vst [vmem:[%s1174] ss:$4 sm:$0xff] %v1036
      %1810 = vst [vmem:[%s1176] ss:$4 sm:$0xff] %v1037
      %1811 = vst [vmem:[%s1178] ss:$4 sm:$0xff] %v1038
      %1812 = vst [vmem:[%s1180] ss:$4 sm:$0xff] %v1039
      %1813 = vst [vmem:[%s1182] ss:$4 sm:$0xff] %v1040
      %v1814 = vld.sshfl [vmem:[#allocation1] sm:$0xff pattern:$0x73625140]
      %v1815 = vld.sshfl [vmem:[#allocation1 + $0x20] sm:$0xff pattern:$0x73625140]
      %2072 = vrot.lane.b32.xlu0 %v1041, 2
      %v2073 = vpop.permute.xlu0 %2072
      %2074 = vrot.lane.b32.xlu0 %v1042, 2
      %v2075 = vpop.permute.xlu0 %2074
      %2076 = vrot.lane.b32.xlu0 %v1043, 2
      %v2077 = vpop.permute.xlu0 %2076
      %2078 = vrot.lane.b32.xlu0 %v1044, 2
      %v2079 = vpop.permute.xlu0 %2078
      %2080 = vrot.lane.b32.xlu0 %v1045, 2
      %v2081 = vpop.permute.xlu0 %2080
      %2082 = vrot.lane.b32.xlu0 %v1046, 2
      %v2083 = vpop.permute.xlu0 %2082
      %2084 = vrot.lane.b32.xlu0 %v1047, 2
      %v2085 = vpop.permute.xlu0 %2084
      %2086 = vrot.lane.b32.xlu0 %v1048, 2
      %v2087 = vpop.permute.xlu0 %2086
      %2088 = vrot.lane.b32.xlu0 %v1049, 2
      %v2089 = vpop.permute.xlu0 %2088
      %2090 = vrot.lane.b32.xlu0 %v1050, 2
      %v2091 = vpop.permute.xlu0 %2090
      %2092 = vrot.lane.b32.xlu0 %v1051, 2
      %v2093 = vpop.permute.xlu0 %2092
      %2094 = vrot.lane.b32.xlu0 %v1052, 2
      %v2095 = vpop.permute.xlu0 %2094
      %2096 = vrot.lane.b32.xlu0 %v1053, 2
      %v2097 = vpop.permute.xlu0 %2096
      %2098 = vrot.lane.b32.xlu0 %v1054, 2
      %v2099 = vpop.permute.xlu0 %2098
      %2100 = vrot.lane.b32.xlu0 %v1055, 2
      %v2101 = vpop.permute.xlu0 %2100
      %2102 = vrot.lane.b32.xlu0 %v1056, 2
      %v2103 = vpop.permute.xlu0 %2102
      %2104 = vrot.lane.b32.xlu0 %v1057, 2
      %v2105 = vpop.permute.xlu0 %2104
      %2106 = vrot.lane.b32.xlu0 %v1058, 2
      %v2107 = vpop.permute.xlu0 %2106
      %2108 = vrot.lane.b32.xlu0 %v1059, 2
      %v2109 = vpop.permute.xlu0 %2108
      %2110 = vrot.lane.b32.xlu0 %v1060, 2
      %v2111 = vpop.permute.xlu0 %2110
      %2112 = vrot.lane.b32.xlu0 %v1061, 2
      %v2113 = vpop.permute.xlu0 %2112
      %2114 = vrot.lane.b32.xlu0 %v1062, 2
      %v2115 = vpop.permute.xlu0 %2114
      %2116 = vrot.lane.b32.xlu0 %v1063, 2
      %v2117 = vpop.permute.xlu0 %2116
      %2118 = vrot.lane.b32.xlu0 %v1064, 2
      %v2119 = vpop.permute.xlu0 %2118
      %2120 = vrot.lane.b32.xlu0 %v1065, 2
      %v2121 = vpop.permute.xlu0 %2120
      %2122 = vrot.lane.b32.xlu0 %v1066, 2
      %v2123 = vpop.permute.xlu0 %2122
      %2124 = vrot.lane.b32.xlu0 %v1067, 2
      %v2125 = vpop.permute.xlu0 %2124
      %2126 = vrot.lane.b32.xlu0 %v1068, 2
      %v2127 = vpop.permute.xlu0 %2126
      %2128 = vrot.lane.b32.xlu0 %v1069, 2
      %v2129 = vpop.permute.xlu0 %2128
      %2130 = vrot.lane.b32.xlu0 %v1070, 2
      %v2131 = vpop.permute.xlu0 %2130
      %2132 = vrot.lane.b32.xlu0 %v1071, 2
      %v2133 = vpop.permute.xlu0 %2132
      %2134 = vrot.lane.b32.xlu0 %v1072, 2
      %v2135 = vpop.permute.xlu0 %2134
      %2136 = vrot.lane.b32.xlu0 %v1073, 2
      %v2137 = vpop.permute.xlu0 %2136
      %2138 = vrot.lane.b32.xlu0 %v1074, 2
      %v2139 = vpop.permute.xlu0 %2138
      %2140 = vrot.lane.b32.xlu0 %v1075, 2
      %v2141 = vpop.permute.xlu0 %2140
      %2142 = vrot.lane.b32.xlu0 %v1076, 2
      %v2143 = vpop.permute.xlu0 %2142
      %2144 = vrot.lane.b32.xlu0 %v1077, 2
      %v2145 = vpop.permute.xlu0 %2144
      %2146 = vrot.lane.b32.xlu0 %v1078, 2
      %v2147 = vpop.permute.xlu0 %2146
      %2148 = vrot.lane.b32.xlu0 %v1079, 2
      %v2149 = vpop.permute.xlu0 %2148
      %2150 = vrot.lane.b32.xlu0 %v1080, 2
      %v2151 = vpop.permute.xlu0 %2150
      %2152 = vrot.lane.b32.xlu0 %v1081, 2
      %v2153 = vpop.permute.xlu0 %2152
      %2154 = vrot.lane.b32.xlu0 %v1082, 2
      %v2155 = vpop.permute.xlu0 %2154
      %2156 = vrot.lane.b32.xlu0 %v1083, 2
      %v2157 = vpop.permute.xlu0 %2156
      %2158 = vrot.lane.b32.xlu0 %v1084, 2
      %v2159 = vpop.permute.xlu0 %2158
      %2160 = vrot.lane.b32.xlu0 %v1085, 2
      %v2161 = vpop.permute.xlu0 %2160
      %2162 = vrot.lane.b32.xlu0 %v1086, 2
      %v2163 = vpop.permute.xlu0 %2162
      %2164 = vrot.lane.b32.xlu0 %v1087, 2
      %v2165 = vpop.permute.xlu0 %2164
      %2166 = vrot.lane.b32.xlu0 %v1088, 2
      %v2167 = vpop.permute.xlu0 %2166
      %2168 = vrot.lane.b32.xlu0 %v1089, 2
      %v2169 = vpop.permute.xlu0 %2168
      %2170 = vrot.lane.b32.xlu0 %v1090, 2
      %v2171 = vpop.permute.xlu0 %2170
      %2172 = vrot.lane.b32.xlu0 %v1091, 2
      %v2173 = vpop.permute.xlu0 %2172
      %2174 = vrot.lane.b32.xlu0 %v1092, 2
      %v2175 = vpop.permute.xlu0 %2174
      %2176 = vrot.lane.b32.xlu0 %v1093, 2
      %v2177 = vpop.permute.xlu0 %2176
      %2178 = vrot.lane.b32.xlu0 %v1094, 2
      %v2179 = vpop.permute.xlu0 %2178
      %2180 = vrot.lane.b32.xlu0 %v1095, 2
      %v2181 = vpop.permute.xlu0 %2180
      %2182 = vrot.lane.b32.xlu0 %v1096, 2
      %v2183 = vpop.permute.xlu0 %2182
      %2184 = vrot.lane.b32.xlu0 %v1097, 2
      %v2185 = vpop.permute.xlu0 %2184
      %2186 = vrot.lane.b32.xlu0 %v1098, 2
      %v2187 = vpop.permute.xlu0 %2186
      %2188 = vrot.lane.b32.xlu0 %v1099, 2
      %v2189 = vpop.permute.xlu0 %2188
      %2190 = vrot.lane.b32.xlu0 %v1100, 2
      %v2191 = vpop.permute.xlu0 %2190
      %2192 = vrot.lane.b32.xlu0 %v1101, 2
      %v2193 = vpop.permute.xlu0 %2192
      %2194 = vrot.lane.b32.xlu0 %v1102, 2
      %v2195 = vpop.permute.xlu0 %2194
      %2196 = vrot.lane.b32.xlu0 %v1103, 2
      %v2197 = vpop.permute.xlu0 %2196
      %2198 = vrot.lane.b32.xlu0 %v1104, 2
      %v2199 = vpop.permute.xlu0 %2198
      %2200 = vrot.lane.b32.xlu0 %v1105, 2
      %v2201 = vpop.permute.xlu0 %2200
      %2202 = vrot.lane.b32.xlu0 %v1106, 2
      %v2203 = vpop.permute.xlu0 %2202
      %2204 = vrot.lane.b32.xlu0 %v1107, 2
      %v2205 = vpop.permute.xlu0 %2204
      %2206 = vrot.lane.b32.xlu0 %v1108, 2
      %v2207 = vpop.permute.xlu0 %2206
      %2208 = vrot.lane.b32.xlu0 %v1109, 2
      %v2209 = vpop.permute.xlu0 %2208
      %2210 = vrot.lane.b32.xlu0 %v1110, 2
      %v2211 = vpop.permute.xlu0 %2210
      %2212 = vrot.lane.b32.xlu0 %v1111, 2
      %v2213 = vpop.permute.xlu0 %2212
      %2214 = vrot.lane.b32.xlu0 %v1112, 2
      %v2215 = vpop.permute.xlu0 %2214
      %2216 = vrot.lane.b32.xlu0 %v1113, 2
      %v2217 = vpop.permute.xlu0 %2216
      %2218 = vrot.lane.b32.xlu0 %v1114, 2
      %v2219 = vpop.permute.xlu0 %2218
      %2220 = vrot.lane.b32.xlu0 %v1115, 2
      %v2221 = vpop.permute.xlu0 %2220
      %2222 = vrot.lane.b32.xlu0 %v1116, 2
      %v2223 = vpop.permute.xlu0 %2222
      %2224 = vrot.lane.b32.xlu0 %v1117, 2
      %v2225 = vpop.permute.xlu0 %2224
      %2226 = vrot.lane.b32.xlu0 %v1118, 2
      %v2227 = vpop.permute.xlu0 %2226
      %2228 = vrot.lane.b32.xlu0 %v1119, 2
      %v2229 = vpop.permute.xlu0 %2228
      %2230 = vrot.lane.b32.xlu0 %v1120, 2
      %v2231 = vpop.permute.xlu0 %2230
      %2232 = vrot.lane.b32.xlu0 %v1121, 2
      %v2233 = vpop.permute.xlu0 %2232
      %2234 = vrot.lane.b32.xlu0 %v1122, 2
      %v2235 = vpop.permute.xlu0 %2234
      %2236 = vrot.lane.b32.xlu0 %v1123, 2
      %v2237 = vpop.permute.xlu0 %2236
      %2238 = vrot.lane.b32.xlu0 %v1124, 2
      %v2239 = vpop.permute.xlu0 %2238
      %2240 = vrot.lane.b32.xlu0 %v1125, 2
      %v2241 = vpop.permute.xlu0 %2240
      %2242 = vrot.lane.b32.xlu0 %v1126, 2
      %v2243 = vpop.permute.xlu0 %2242
      %2244 = vrot.lane.b32.xlu0 %v1127, 2
      %v2245 = vpop.permute.xlu0 %2244
      %2246 = vrot.lane.b32.xlu0 %v1128, 2
      %v2247 = vpop.permute.xlu0 %2246
      %2248 = vrot.lane.b32.xlu0 %v1129, 2
      %v2249 = vpop.permute.xlu0 %2248
      %2250 = vrot.lane.b32.xlu0 %v1130, 2
      %v2251 = vpop.permute.xlu0 %2250
      %2252 = vrot.lane.b32.xlu0 %v1131, 2
      %v2253 = vpop.permute.xlu0 %2252
      %2254 = vrot.lane.b32.xlu0 %v1132, 2
      %v2255 = vpop.permute.xlu0 %2254
      %2256 = vrot.lane.b32.xlu0 %v1133, 2
      %v2257 = vpop.permute.xlu0 %2256
      %2258 = vrot.lane.b32.xlu0 %v1134, 2
      %v2259 = vpop.permute.xlu0 %2258
      %2260 = vrot.lane.b32.xlu0 %v1135, 2
      %v2261 = vpop.permute.xlu0 %2260
      %2262 = vrot.lane.b32.xlu0 %v1136, 2
      %v2263 = vpop.permute.xlu0 %2262
      %2264 = vrot.lane.b32.xlu0 %v1137, 2
      %v2265 = vpop.permute.xlu0 %2264
      %2266 = vrot.lane.b32.xlu0 %v1138, 2
      %v2267 = vpop.permute.xlu0 %2266
      %2268 = vrot.lane.b32.xlu0 %v1139, 2
      %v2269 = vpop.permute.xlu0 %2268
      %2270 = vrot.lane.b32.xlu0 %v1140, 2
      %v2271 = vpop.permute.xlu0 %2270
      %2272 = vrot.lane.b32.xlu0 %v1141, 2
      %v2273 = vpop.permute.xlu0 %2272
      %2274 = vrot.lane.b32.xlu0 %v1142, 2
      %v2275 = vpop.permute.xlu0 %2274
      %2276 = vrot.lane.b32.xlu0 %v1143, 2
      %v2277 = vpop.permute.xlu0 %2276
      %2278 = vrot.lane.b32.xlu0 %v1144, 2
      %v2279 = vpop.permute.xlu0 %2278
      %2280 = vrot.lane.b32.xlu0 %v1145, 2
      %v2281 = vpop.permute.xlu0 %2280
      %2282 = vrot.lane.b32.xlu0 %v1146, 2
      %v2283 = vpop.permute.xlu0 %2282
      %2284 = vrot.lane.b32.xlu0 %v1147, 2
      %v2285 = vpop.permute.xlu0 %2284
      %2286 = vrot.lane.b32.xlu0 %v1148, 2
      %v2287 = vpop.permute.xlu0 %2286
      %2288 = vrot.lane.b32.xlu0 %v1149, 2
      %v2289 = vpop.permute.xlu0 %2288
      %2290 = vrot.lane.b32.xlu0 %v1150, 2
      %v2291 = vpop.permute.xlu0 %2290
      %2292 = vrot.lane.b32.xlu0 %v1151, 2
      %v2293 = vpop.permute.xlu0 %2292
      %2294 = vrot.lane.b32.xlu0 %v1152, 2
      %v2295 = vpop.permute.xlu0 %2294
      %2296 = vrot.lane.b32.xlu0 %v1153, 2
      %v2297 = vpop.permute.xlu0 %2296
      %2298 = vrot.lane.b32.xlu0 %v1154, 2
      %v2299 = vpop.permute.xlu0 %2298
      %2300 = vrot.lane.b32.xlu0 %v1155, 2
      %v2301 = vpop.permute.xlu0 %2300
      %2302 = vrot.lane.b32.xlu0 %v1156, 2
      %v2303 = vpop.permute.xlu0 %2302
      %2304 = vrot.lane.b32.xlu0 %v1157, 2
      %v2305 = vpop.permute.xlu0 %2304
      %2306 = vrot.lane.b32.xlu0 %v1158, 2
      %v2307 = vpop.permute.xlu0 %2306
      %2308 = vrot.lane.b32.xlu0 %v1159, 2
      %v2309 = vpop.permute.xlu0 %2308
      %2310 = vrot.lane.b32.xlu0 %v1160, 2
      %v2311 = vpop.permute.xlu0 %2310
      %2312 = vrot.lane.b32.xlu0 %v1161, 2
      %v2313 = vpop.permute.xlu0 %2312
      %2314 = vrot.lane.b32.xlu0 %v1162, 2
      %v2315 = vpop.permute.xlu0 %2314
      %2316 = vrot.lane.b32.xlu0 %v1163, 2
      %v2317 = vpop.permute.xlu0 %2316
      %2318 = vrot.lane.b32.xlu0 %v1164, 2
      %v2319 = vpop.permute.xlu0 %2318
      %2320 = vrot.lane.b32.xlu0 %v1165, 2
      %v2321 = vpop.permute.xlu0 %2320
      %2322 = vrot.lane.b32.xlu0 %v1166, 2
      %v2323 = vpop.permute.xlu0 %2322
      %2324 = vrot.lane.b32.xlu0 %v1167, 2
      %v2325 = vpop.permute.xlu0 %2324
      %2326 = vrot.lane.b32.xlu0 %v1168, 2
      %v2327 = vpop.permute.xlu0 %2326
      %vm2456 = vcmask 15360
      %v2457 = vsel %vm2456, %v1184, %v2073
      %v2458 = vsel %vm2456, %v1185, %v2075
      %v2459 = vsel %vm2456, %v1194, %v2077
      %v2460 = vsel %vm2456, %v1195, %v2079
      %v2461 = vsel %vm2456, %v1204, %v2081
      %v2462 = vsel %vm2456, %v1205, %v2083
      %v2463 = vsel %vm2456, %v1214, %v2085
      %v2464 = vsel %vm2456, %v1215, %v2087
      %v2465 = vsel %vm2456, %v1224, %v2089
      %v2466 = vsel %vm2456, %v1225, %v2091
      %v2467 = vsel %vm2456, %v1234, %v2093
      %v2468 = vsel %vm2456, %v1235, %v2095
      %v2469 = vsel %vm2456, %v1244, %v2097
      %v2470 = vsel %vm2456, %v1245, %v2099
      %v2471 = vsel %vm2456, %v1254, %v2101
      %v2472 = vsel %vm2456, %v1255, %v2103
      %v2473 = vsel %vm2456, %v1264, %v2105
      %v2474 = vsel %vm2456, %v1265, %v2107
      %v2475 = vsel %vm2456, %v1274, %v2109
      %v2476 = vsel %vm2456, %v1275, %v2111
      %v2477 = vsel %vm2456, %v1284, %v2113
      %v2478 = vsel %vm2456, %v1285, %v2115
      %v2479 = vsel %vm2456, %v1294, %v2117
      %v2480 = vsel %vm2456, %v1295, %v2119
      %v2481 = vsel %vm2456, %v1304, %v2121
      %v2482 = vsel %vm2456, %v1305, %v2123
      %v2483 = vsel %vm2456, %v1314, %v2125
      %v2484 = vsel %vm2456, %v1315, %v2127
      %v2485 = vsel %vm2456, %v1324, %v2129
      %v2486 = vsel %vm2456, %v1325, %v2131
      %v2487 = vsel %vm2456, %v1334, %v2133
      %v2488 = vsel %vm2456, %v1335, %v2135
      %v2489 = vsel %vm2456, %v1344, %v2137
      %v2490 = vsel %vm2456, %v1345, %v2139
      %v2491 = vsel %vm2456, %v1354, %v2141
      %v2492 = vsel %vm2456, %v1355, %v2143
      %v2493 = vsel %vm2456, %v1364, %v2145
      %v2494 = vsel %vm2456, %v1365, %v2147
      %v2495 = vsel %vm2456, %v1374, %v2149
      %v2496 = vsel %vm2456, %v1375, %v2151
      %v2497 = vsel %vm2456, %v1384, %v2153
      %v2498 = vsel %vm2456, %v1385, %v2155
      %v2499 = vsel %vm2456, %v1394, %v2157
      %v2500 = vsel %vm2456, %v1395, %v2159
      %v2501 = vsel %vm2456, %v1404, %v2161
      %v2502 = vsel %vm2456, %v1405, %v2163
      %v2503 = vsel %vm2456, %v1414, %v2165
      %v2504 = vsel %vm2456, %v1415, %v2167
      %v2505 = vsel %vm2456, %v1424, %v2169
      %v2506 = vsel %vm2456, %v1425, %v2171
      %v2507 = vsel %vm2456, %v1434, %v2173
      %v2508 = vsel %vm2456, %v1435, %v2175
      %v2509 = vsel %vm2456, %v1444, %v2177
      %v2510 = vsel %vm2456, %v1445, %v2179
      %v2511 = vsel %vm2456, %v1454, %v2181
      %v2512 = vsel %vm2456, %v1455, %v2183
      %v2513 = vsel %vm2456, %v1464, %v2185
      %v2514 = vsel %vm2456, %v1465, %v2187
      %v2515 = vsel %vm2456, %v1474, %v2189
      %v2516 = vsel %vm2456, %v1475, %v2191
      %v2517 = vsel %vm2456, %v1484, %v2193
      %v2518 = vsel %vm2456, %v1485, %v2195
      %v2519 = vsel %vm2456, %v1494, %v2197
      %v2520 = vsel %vm2456, %v1495, %v2199
      %v2521 = vsel %vm2456, %v1504, %v2201
      %v2522 = vsel %vm2456, %v1505, %v2203
      %v2523 = vsel %vm2456, %v1514, %v2205
      %v2524 = vsel %vm2456, %v1515, %v2207
      %v2525 = vsel %vm2456, %v1524, %v2209
      %v2526 = vsel %vm2456, %v1525, %v2211
      %v2527 = vsel %vm2456, %v1534, %v2213
      %v2528 = vsel %vm2456, %v1535, %v2215
      %v2529 = vsel %vm2456, %v1544, %v2217
      %v2530 = vsel %vm2456, %v1545, %v2219
      %v2531 = vsel %vm2456, %v1554, %v2221
      %v2532 = vsel %vm2456, %v1555, %v2223
      %v2533 = vsel %vm2456, %v1564, %v2225
      %v2534 = vsel %vm2456, %v1565, %v2227
      %v2535 = vsel %vm2456, %v1574, %v2229
      %v2536 = vsel %vm2456, %v1575, %v2231
      %v2537 = vsel %vm2456, %v1584, %v2233
      %v2538 = vsel %vm2456, %v1585, %v2235
      %v2539 = vsel %vm2456, %v1594, %v2237
      %v2540 = vsel %vm2456, %v1595, %v2239
      %v2541 = vsel %vm2456, %v1604, %v2241
      %v2542 = vsel %vm2456, %v1605, %v2243
      %v2543 = vsel %vm2456, %v1614, %v2245
      %v2544 = vsel %vm2456, %v1615, %v2247
      %v2545 = vsel %vm2456, %v1624, %v2249
      %v2546 = vsel %vm2456, %v1625, %v2251
      %v2547 = vsel %vm2456, %v1634, %v2253
      %v2548 = vsel %vm2456, %v1635, %v2255
      %v2549 = vsel %vm2456, %v1644, %v2257
      %v2550 = vsel %vm2456, %v1645, %v2259
      %v2551 = vsel %vm2456, %v1654, %v2261
      %v2552 = vsel %vm2456, %v1655, %v2263
      %v2553 = vsel %vm2456, %v1664, %v2265
      %v2554 = vsel %vm2456, %v1665, %v2267
      %v2555 = vsel %vm2456, %v1674, %v2269
      %v2556 = vsel %vm2456, %v1675, %v2271
      %v2557 = vsel %vm2456, %v1684, %v2273
      %v2558 = vsel %vm2456, %v1685, %v2275
      %v2559 = vsel %vm2456, %v1694, %v2277
      %v2560 = vsel %vm2456, %v1695, %v2279
      %v2561 = vsel %vm2456, %v1704, %v2281
      %v2562 = vsel %vm2456, %v1705, %v2283
      %v2563 = vsel %vm2456, %v1714, %v2285
      %v2564 = vsel %vm2456, %v1715, %v2287
      %v2565 = vsel %vm2456, %v1724, %v2289
      %v2566 = vsel %vm2456, %v1725, %v2291
      %v2567 = vsel %vm2456, %v1734, %v2293
      %v2568 = vsel %vm2456, %v1735, %v2295
      %v2569 = vsel %vm2456, %v1744, %v2297
      %v2570 = vsel %vm2456, %v1745, %v2299
      %v2571 = vsel %vm2456, %v1754, %v2301
      %v2572 = vsel %vm2456, %v1755, %v2303
      %v2573 = vsel %vm2456, %v1764, %v2305
      %v2574 = vsel %vm2456, %v1765, %v2307
      %v2575 = vsel %vm2456, %v1774, %v2309
      %v2576 = vsel %vm2456, %v1775, %v2311
      %v2577 = vsel %vm2456, %v1784, %v2313
      %v2578 = vsel %vm2456, %v1785, %v2315
      %v2579 = vsel %vm2456, %v1794, %v2317
      %v2580 = vsel %vm2456, %v1795, %v2319
      %v2581 = vsel %vm2456, %v1804, %v2321
      %v2582 = vsel %vm2456, %v1805, %v2323
      %v2583 = vsel %vm2456, %v1814, %v2325
      %v2584 = vsel %vm2456, %v1815, %v2327
      %2585 = vst.msk [vmem:[%s276] sm:$0xff] %vm315, %v2457
      %2586 = vst.msk [vmem:[%s276 + $0x8] sm:$0xff] %vm315, %v2458
      %2587 = vst.msk [vmem:[%s276 + $0x10] sm:$0xff] %vm315, %v2459
      %2588 = vst.msk [vmem:[%s276 + $0x18] sm:$0xff] %vm315, %v2460
      %2589 = vst.msk [vmem:[%s276 + $0x20] sm:$0xff] %vm315, %v2461
      %2590 = vst.msk [vmem:[%s276 + $0x28] sm:$0xff] %vm315, %v2462
      %2591 = vst.msk [vmem:[%s276 + $0x30] sm:$0xff] %vm315, %v2463
      %2592 = vst.msk [vmem:[%s276 + $0x38] sm:$0xff] %vm315, %v2464
      %2593 = vst.msk [vmem:[%s276 + $0x40] sm:$0xff] %vm315, %v2465
      %2594 = vst.msk [vmem:[%s276 + $0x48] sm:$0xff] %vm315, %v2466
      %2595 = vst.msk [vmem:[%s276 + $0x50] sm:$0xff] %vm315, %v2467
      %2596 = vst.msk [vmem:[%s276 + $0x58] sm:$0xff] %vm315, %v2468
      %2597 = vst.msk [vmem:[%s276 + $0x60] sm:$0xff] %vm315, %v2469
      %2598 = vst.msk [vmem:[%s276 + $0x68] sm:$0xff] %vm315, %v2470
      %2599 = vst.msk [vmem:[%s276 + $0x70] sm:$0xff] %vm315, %v2471
      %2600 = vst.msk [vmem:[%s276 + $0x78] sm:$0xff] %vm315, %v2472
      %2601 = vst.msk [vmem:[%s276 + $0x80] sm:$0xff] %vm315, %v2473
      %2602 = vst.msk [vmem:[%s276 + $0x88] sm:$0xff] %vm315, %v2474
      %2603 = vst.msk [vmem:[%s276 + $0x90] sm:$0xff] %vm315, %v2475
      %2604 = vst.msk [vmem:[%s276 + $0x98] sm:$0xff] %vm315, %v2476
      %2605 = vst.msk [vmem:[%s276 + $0xa0] sm:$0xff] %vm315, %v2477
      %2606 = vst.msk [vmem:[%s276 + $0xa8] sm:$0xff] %vm315, %v2478
      %2607 = vst.msk [vmem:[%s276 + $0xb0] sm:$0xff] %vm315, %v2479
      %2608 = vst.msk [vmem:[%s276 + $0xb8] sm:$0xff] %vm315, %v2480
      %2609 = vst.msk [vmem:[%s276 + $0xc0] sm:$0xff] %vm315, %v2481
      %2610 = vst.msk [vmem:[%s276 + $0xc8] sm:$0xff] %vm315, %v2482
      %2611 = vst.msk [vmem:[%s276 + $0xd0] sm:$0xff] %vm315, %v2483
      %2612 = vst.msk [vmem:[%s276 + $0xd8] sm:$0xff] %vm315, %v2484
      %2613 = vst.msk [vmem:[%s276 + $0xe0] sm:$0xff] %vm315, %v2485
      %2614 = vst.msk [vmem:[%s276 + $0xe8] sm:$0xff] %vm315, %v2486
      %2615 = vst.msk [vmem:[%s276 + $0xf0] sm:$0xff] %vm315, %v2487
      %2616 = vst.msk [vmem:[%s276 + $0xf8] sm:$0xff] %vm315, %v2488
      %2617 = vst.msk [vmem:[%s276 + $0x100] sm:$0xff] %vm315, %v2489
      %2618 = vst.msk [vmem:[%s276 + $0x108] sm:$0xff] %vm315, %v2490
      %2619 = vst.msk [vmem:[%s276 + $0x110] sm:$0xff] %vm315, %v2491
      %2620 = vst.msk [vmem:[%s276 + $0x118] sm:$0xff] %vm315, %v2492
      %2621 = vst.msk [vmem:[%s276 + $0x120] sm:$0xff] %vm315, %v2493
      %2622 = vst.msk [vmem:[%s276 + $0x128] sm:$0xff] %vm315, %v2494
      %2623 = vst.msk [vmem:[%s276 + $0x130] sm:$0xff] %vm315, %v2495
      %2624 = vst.msk [vmem:[%s276 + $0x138] sm:$0xff] %vm315, %v2496
      %2625 = vst.msk [vmem:[%s276 + $0x140] sm:$0xff] %vm315, %v2497
      %2626 = vst.msk [vmem:[%s276 + $0x148] sm:$0xff] %vm315, %v2498
      %2627 = vst.msk [vmem:[%s276 + $0x150] sm:$0xff] %vm315, %v2499
      %2628 = vst.msk [vmem:[%s276 + $0x158] sm:$0xff] %vm315, %v2500
      %2629 = vst.msk [vmem:[%s276 + $0x160] sm:$0xff] %vm315, %v2501
      %2630 = vst.msk [vmem:[%s276 + $0x168] sm:$0xff] %vm315, %v2502
      %2631 = vst.msk [vmem:[%s276 + $0x170] sm:$0xff] %vm315, %v2503
      %2632 = vst.msk [vmem:[%s276 + $0x178] sm:$0xff] %vm315, %v2504
      %2633 = vst.msk [vmem:[%s276 + $0x180] sm:$0xff] %vm315, %v2505
      %2634 = vst.msk [vmem:[%s276 + $0x188] sm:$0xff] %vm315, %v2506
      %2635 = vst.msk [vmem:[%s276 + $0x190] sm:$0xff] %vm315, %v2507
      %2636 = vst.msk [vmem:[%s276 + $0x198] sm:$0xff] %vm315, %v2508
      %2637 = vst.msk [vmem:[%s276 + $0x1a0] sm:$0xff] %vm315, %v2509
      %2638 = vst.msk [vmem:[%s276 + $0x1a8] sm:$0xff] %vm315, %v2510
      %2639 = vst.msk [vmem:[%s276 + $0x1b0] sm:$0xff] %vm315, %v2511
      %2640 = vst.msk [vmem:[%s276 + $0x1b8] sm:$0xff] %vm315, %v2512
      %2641 = vst.msk [vmem:[%s276 + $0x1c0] sm:$0xff] %vm315, %v2513
      %2642 = vst.msk [vmem:[%s276 + $0x1c8] sm:$0xff] %vm315, %v2514
      %2643 = vst.msk [vmem:[%s276 + $0x1d0] sm:$0xff] %vm315, %v2515
      %2644 = vst.msk [vmem:[%s276 + $0x1d8] sm:$0xff] %vm315, %v2516
      %2645 = vst.msk [vmem:[%s276 + $0x1e0] sm:$0xff] %vm315, %v2517
      %2646 = vst.msk [vmem:[%s276 + $0x1e8] sm:$0xff] %vm315, %v2518
      %2647 = vst.msk [vmem:[%s276 + $0x1f0] sm:$0xff] %vm315, %v2519
      %2648 = vst.msk [vmem:[%s276 + $0x1f8] sm:$0xff] %vm315, %v2520
      %2649 = vst.msk [vmem:[%s276 + $0x200] sm:$0xff] %vm315, %v2521
      %2650 = vst.msk [vmem:[%s276 + $0x208] sm:$0xff] %vm315, %v2522
      %2651 = vst.msk [vmem:[%s276 + $0x210] sm:$0xff] %vm315, %v2523
      %2652 = vst.msk [vmem:[%s276 + $0x218] sm:$0xff] %vm315, %v2524
      %2653 = vst.msk [vmem:[%s276 + $0x220] sm:$0xff] %vm315, %v2525
      %2654 = vst.msk [vmem:[%s276 + $0x228] sm:$0xff] %vm315, %v2526
      %2655 = vst.msk [vmem:[%s276 + $0x230] sm:$0xff] %vm315, %v2527
      %2656 = vst.msk [vmem:[%s276 + $0x238] sm:$0xff] %vm315, %v2528
      %2657 = vst.msk [vmem:[%s276 + $0x240] sm:$0xff] %vm315, %v2529
      %2658 = vst.msk [vmem:[%s276 + $0x248] sm:$0xff] %vm315, %v2530
      %2659 = vst.msk [vmem:[%s276 + $0x250] sm:$0xff] %vm315, %v2531
      %2660 = vst.msk [vmem:[%s276 + $0x258] sm:$0xff] %vm315, %v2532
      %2661 = vst.msk [vmem:[%s276 + $0x260] sm:$0xff] %vm315, %v2533
      %2662 = vst.msk [vmem:[%s276 + $0x268] sm:$0xff] %vm315, %v2534
      %2663 = vst.msk [vmem:[%s276 + $0x270] sm:$0xff] %vm315, %v2535
      %2664 = vst.msk [vmem:[%s276 + $0x278] sm:$0xff] %vm315, %v2536
      %2665 = vst.msk [vmem:[%s276 + $0x280] sm:$0xff] %vm315, %v2537
      %2666 = vst.msk [vmem:[%s276 + $0x288] sm:$0xff] %vm315, %v2538
      %2667 = vst.msk [vmem:[%s276 + $0x290] sm:$0xff] %vm315, %v2539
      %2668 = vst.msk [vmem:[%s276 + $0x298] sm:$0xff] %vm315, %v2540
      %2669 = vst.msk [vmem:[%s276 + $0x2a0] sm:$0xff] %vm315, %v2541
      %2670 = vst.msk [vmem:[%s276 + $0x2a8] sm:$0xff] %vm315, %v2542
      %2671 = vst.msk [vmem:[%s276 + $0x2b0] sm:$0xff] %vm315, %v2543
      %2672 = vst.msk [vmem:[%s276 + $0x2b8] sm:$0xff] %vm315, %v2544
      %2673 = vst.msk [vmem:[%s276 + $0x2c0] sm:$0xff] %vm315, %v2545
      %2674 = vst.msk [vmem:[%s276 + $0x2c8] sm:$0xff] %vm315, %v2546
      %2675 = vst.msk [vmem:[%s276 + $0x2d0] sm:$0xff] %vm315, %v2547
      %2676 = vst.msk [vmem:[%s276 + $0x2d8] sm:$0xff] %vm315, %v2548
      %2677 = vst.msk [vmem:[%s276 + $0x2e0] sm:$0xff] %vm315, %v2549
      %2678 = vst.msk [vmem:[%s276 + $0x2e8] sm:$0xff] %vm315, %v2550
      %2679 = vst.msk [vmem:[%s276 + $0x2f0] sm:$0xff] %vm315, %v2551
      %2680 = vst.msk [vmem:[%s276 + $0x2f8] sm:$0xff] %vm315, %v2552
      %2681 = vst.msk [vmem:[%s276 + $0x300] sm:$0xff] %vm315, %v2553
      %2682 = vst.msk [vmem:[%s276 + $0x308] sm:$0xff] %vm315, %v2554
      %2683 = vst.msk [vmem:[%s276 + $0x310] sm:$0xff] %vm315, %v2555
      %2684 = vst.msk [vmem:[%s276 + $0x318] sm:$0xff] %vm315, %v2556
      %2685 = vst.msk [vmem:[%s276 + $0x320] sm:$0xff] %vm315, %v2557
      %2686 = vst.msk [vmem:[%s276 + $0x328] sm:$0xff] %vm315, %v2558
      %2687 = vst.msk [vmem:[%s276 + $0x330] sm:$0xff] %vm315, %v2559
      %2688 = vst.msk [vmem:[%s276 + $0x338] sm:$0xff] %vm315, %v2560
      %2689 = vst.msk [vmem:[%s276 + $0x340] sm:$0xff] %vm315, %v2561
      %2690 = vst.msk [vmem:[%s276 + $0x348] sm:$0xff] %vm315, %v2562
      %2691 = vst.msk [vmem:[%s276 + $0x350] sm:$0xff] %vm315, %v2563
      %2692 = vst.msk [vmem:[%s276 + $0x358] sm:$0xff] %vm315, %v2564
      %2693 = vst.msk [vmem:[%s276 + $0x360] sm:$0xff] %vm315, %v2565
      %2694 = vst.msk [vmem:[%s276 + $0x368] sm:$0xff] %vm315, %v2566
      %2695 = vst.msk [vmem:[%s276 + $0x370] sm:$0xff] %vm315, %v2567
      %2696 = vst.msk [vmem:[%s276 + $0x378] sm:$0xff] %vm315, %v2568
      %2697 = vst.msk [vmem:[%s276 + $0x380] sm:$0xff] %vm315, %v2569
      %2698 = vst.msk [vmem:[%s276 + $0x388] sm:$0xff] %vm315, %v2570
      %2699 = vst.msk [vmem:[%s276 + $0x390] sm:$0xff] %vm315, %v2571
      %2700 = vst.msk [vmem:[%s276 + $0x398] sm:$0xff] %vm315, %v2572
      %2701 = vst.msk [vmem:[%s276 + $0x3a0] sm:$0xff] %vm315, %v2573
      %2702 = vst.msk [vmem:[%s276 + $0x3a8] sm:$0xff] %vm315, %v2574
      %2703 = vst.msk [vmem:[%s276 + $0x3b0] sm:$0xff] %vm315, %v2575
      %2704 = vst.msk [vmem:[%s276 + $0x3b8] sm:$0xff] %vm315, %v2576
      %2705 = vst.msk [vmem:[%s276 + $0x3c0] sm:$0xff] %vm315, %v2577
      %2706 = vst.msk [vmem:[%s276 + $0x3c8] sm:$0xff] %vm315, %v2578
      %2707 = vst.msk [vmem:[%s276 + $0x3d0] sm:$0xff] %vm315, %v2579
      %2708 = vst.msk [vmem:[%s276 + $0x3d8] sm:$0xff] %vm315, %v2580
      %2709 = vst.msk [vmem:[%s276 + $0x3e0] sm:$0xff] %vm315, %v2581
      %2710 = vst.msk [vmem:[%s276 + $0x3e8] sm:$0xff] %vm315, %v2582
      %2711 = vst.msk [vmem:[%s276 + $0x3f0] sm:$0xff] %vm315, %v2583
      %2712 = vst.msk [vmem:[%s276 + $0x3f8] sm:$0xff] %vm315, %v2584
      %s2713 = smul.u32 32, %s20
      %p2714 = scmp.lt.s32.totalorder %s19, 1
      %s2715 = scalar_select %p2714, %s19, 1
      %p2716 = scmp.lt.s32.totalorder %s2713, 31
      %s2717 = scalar_select %p2716, %s2713, 31
      %s2718 = smul.addr %s2717, 4
      %s2719 = smul.addr %s2715, 128
      %s2720 = sadd.s32 %s2718, %s2719
      %s2721 = smul.addr %s2720, 8
      %s2722 = scalar_lea.vmem %s4, %s2721
      // Predicated region
      $region37: #{tpu_custom_call.1} parent=35 // pred_check
        %p2723 = pneg %p145
      $region38: #{tpu_custom_call.1} parent=35 // pred_check_branch
        %2725 = sbr.rel (%p2723) target = $region40
      $region39: #{tpu_custom_call.1} parent=35 // pred_region
        %s2726 = smul.u32 32, %s20
      $region40: #{tpu_custom_call.1} parent=35 // pred_fallthru
        _
    $region36: #{tpu_custom_call.1} parent=5 // pred_fallthru
      _
    %p2727 = scmp.le.s32.totalorder 2, %s10
    // Predicated region
    $region41: #{tpu_custom_call.1} parent=5 // pred_check
      %p2728 = pneg %p2727
    $region42: #{tpu_custom_call.1} parent=5 // pred_check_branch
      %2730 = sbr.rel (%p2728) target = $region44
    $region43: #{tpu_custom_call.1} parent=5 // pred_region
      %s2731 = ssub.s32 %s10, 2
      // Predicated region
      $region45: #{tpu_custom_call.1} parent=43 // pred_check
        %p2732 = pneg %p151
      $region46: #{tpu_custom_call.1} parent=43 // pred_check_branch
        %2734 = sbr.rel (%p2732) target = $region48
      $region47: #{tpu_custom_call.1} parent=43 // pred_region
        %s2735 = smul.u32 32, %s22
        %p2736 = scmp.lt.s32.totalorder %s21, 1
        %s2737 = scalar_select %p2736, %s21, 1
        %p2738 = scmp.lt.s32.totalorder %s2735, 31
        %s2739 = scalar_select %p2738, %s2735, 31
        %s2740 = smul.addr %s2739, 4
        %s2741 = smul.addr %s2737, 128
        %s2742 = sadd.s32 %s2740, %s2741
        %s2743 = smul.addr %s2742, 8
        %s2744 = scalar_lea.vmem %s4, %s2743
      $region48: #{tpu_custom_call.1} parent=43 // pred_fallthru
        _
    $region44: #{tpu_custom_call.1} parent=5 // pred_fallthru
      _
  $region6: #{tpu_custom_call.1} parent=0 // loop_footer
    %s14 = sadd.s32 1, %s10
  $region7: #{tpu_custom_call.1} parent=0 // loop_footer_branch
    %9 = sbr.rel target = $region3
  $region8: #{tpu_custom_call.1} parent=0 // loop_exit
    _

</llo_original>
